<compile_context>
chip_gen: v7x
topology: tpu7x:2x2x1
jax: 0.10.0
libtpu: 0.0.40
codegen_flags: <defaults>
</compile_context>

<pallas_src>
import jax
import jax.numpy as jnp
from jax.experimental import pallas as pl
from jax.experimental.pallas import tpu as pltpu


BT = 8  # samples per grid step (sublane-aligned batch tile)


# ---------------------------------------------------------------------------
# Fused Pallas kernel: whole forward pass for one batch tile, 5 MXU matmuls.
# ---------------------------------------------------------------------------
def _lenet_kernel(x1_ref, A_ref, cb1_ref, C_ref, cb2_ref,
                  W1_ref, fb1_ref, W2_ref, fb2_ref, W3_ref, fb3_ref, out_ref):
    f32 = jnp.float32
    bf16 = jnp.bfloat16
    bt = out_ref.shape[0]
    R = bt * 16                                   # conv1 rows per dh parity

    # ---- conv1 + ReLU + 2x2 max-pool: ONE batched MXU matmul ---------------
    # x1 rows are ordered [dh, b, p*6+t] (16 rows per (dh,b), rows 12..15 pad),
    # lanes are the 5 input rows concatenated (i*28 + w, padded 140 -> 256).
    lhs1 = x1_ref[...].reshape(2 * R, 256)                          # bf16
    y1 = jnp.dot(lhs1, A_ref[...], preferred_element_type=f32)      # (2R, 256)
    y1 = jnp.maximum(y1[:R], y1[R:])              # pool over the row pair (dh)
    y1 = jnp.maximum(y1[:, :128], y1[:, 128:])    # pool over the column pair
    pooled1 = jnp.maximum(y1 + cb1_ref[...], 0.0)  # (R, 128), lane = pw*6 + oc

    # ---- conv2 + ReLU + 2x2 max-pool: lane-concat LHS, ONE matmul (K=640) --
    p3 = pooled1.reshape(bt, 16, 128)             # [b, p*6+t, lane]
    parts = []
    for dh in range(2):                           # row inside the pooling pair
        cols = []
        for i in range(5):                        # conv kernel row offset
            s = dh + i
            c0 = (s % 2) * 6 + s // 2             # parity-split row window
            cols.append(p3[:, c0:c0 + 4, :])      # (bt, 4, 128)
        parts.append(jnp.concatenate(cols, axis=2))        # (bt, 4, 640)
    lhs2 = jnp.concatenate(parts, axis=0).reshape(2 * bt * 4, 640).astype(bf16)
    y2 = jnp.dot(lhs2, C_ref[...], preferred_element_type=f32)      # (8bt, 256)
    y2 = jnp.maximum(y2[:bt * 4], y2[bt * 4:])    # pool over the row pair (dh)
    y2 = jnp.maximum(y2[:, :128], y2[:, 128:])    # pool over the column pair
    z = jnp.maximum(y2 + cb2_ref[...], 0.0)       # (bt*4, 128), rows [b, t2]

    # ---- fc1 (view(-1,256) folded into K=512), fc2, fc3 — batched ----------
    zf = z.astype(bf16).reshape(bt, 512)          # lane = t2*128 + pw*16 + oc
    h = jnp.dot(zf, W1_ref[...], preferred_element_type=f32) + fb1_ref[...]
    h = jnp.maximum(h, 0.0).astype(bf16)
    h = jnp.dot(h, W2_ref[...], preferred_element_type=f32) + fb2_ref[...]
    h = jnp.maximum(h, 0.0).astype(bf16)
    out_ref[...] = jnp.dot(h, W3_ref[...], preferred_element_type=f32) + fb3_ref[...]


# ---------------------------------------------------------------------------
# One-time host-side parameter packing (banded conv weights, K-concatenated,
# padded FC weights, all matmul weights cast to bf16).
# ---------------------------------------------------------------------------
def prepare_params(p):
    f32, bf16 = jnp.float32, jnp.bfloat16
    w1 = p["conv1_w"].astype(f32)                     # (6, 1, 5, 5)  OIHW
    w2 = p["conv2_w"].astype(f32)                     # (16, 6, 5, 5) OIHW

    # conv1 banded weights concatenated along K: A_cat[i*28 + w_in, col].
    # Columns [0,128) produce even output columns (ow = 2*pw), [128,256) odd;
    # inside each half the lane index is pw*6 + oc (72 real lanes).
    w1t = jnp.transpose(w1[:, 0], (1, 2, 0))          # (kh, kw, oc)
    Ae = jnp.zeros((5, 28, 12, 6), f32)
    Ao = jnp.zeros((5, 28, 12, 6), f32)
    for pw in range(12):
        Ae = Ae.at[:, 2 * pw:2 * pw + 5, pw, :].set(w1t)
        Ao = Ao.at[:, 2 * pw + 1:2 * pw + 6, pw, :].set(w1t)
    Ae = jnp.pad(Ae.reshape(5, 28, 72), ((0, 0), (0, 0), (0, 56)))
    Ao = jnp.pad(Ao.reshape(5, 28, 72), ((0, 0), (0, 0), (0, 56)))
    A = jnp.concatenate([Ae, Ao], axis=-1)            # (5, 28, 256)
    A_cat = jnp.pad(A.reshape(140, 256), ((0, 116), (0, 0)))        # (256, 256)
    cb1 = jnp.pad(jnp.tile(p["conv1_b"].astype(f32), 12), (0, 56)).reshape(1, 128)

    # conv2 banded weights concatenated along K: C_cat[i*128 + lane_in, col].
    # Input rows are the interleaved (w*6 + c) lanes, output lane = pw*16 + oc.
    w2t = jnp.transpose(w2, (2, 3, 1, 0))             # (kh, kw, cin, oc)
    Ce = jnp.zeros((5, 12, 6, 4, 16), f32)
    Co = jnp.zeros((5, 12, 6, 4, 16), f32)
    for pw in range(4):
        Ce = Ce.at[:, 2 * pw:2 * pw + 5, :, pw, :].set(w2t)
        Co = Co.at[:, 2 * pw + 1:2 * pw + 6, :, pw, :].set(w2t)
    Ce = jnp.pad(Ce.reshape(5, 72, 64), ((0, 0), (0, 56), (0, 64)))
    Co = jnp.pad(Co.reshape(5, 72, 64), ((0, 0), (0, 56), (0, 64)))
    C_cat = jnp.concatenate([Ce, Co], axis=-1).reshape(640, 256)
    cb2 = jnp.pad(jnp.tile(p["conv2_b"].astype(f32), 4), (0, 64)).reshape(1, 128)

    # fc1 with the NCHW flatten folded in, the four spatial-row blocks stacked
    # along K: W1_cat[t2*128 + pw*16 + oc, n] = fc1_w[n, oc*16 + t2*4 + pw].
    T = p["fc1_w"].astype(f32).reshape(120, 16, 4, 4).transpose(2, 3, 1, 0)
    W1_cat = jnp.pad(T.reshape(4, 64, 120), ((0, 0), (0, 64), (0, 8))).reshape(512, 128)
    fb1 = jnp.pad(p["fc1_b"].astype(f32), (0, 8)).reshape(1, 128)

    W2 = jnp.pad(p["fc2_w"].astype(f32).T, ((0, 8), (0, 44)))        # (128, 128)
    fb2 = jnp.pad(p["fc2_b"].astype(f32), (0, 44)).reshape(1, 128)
    W3 = jnp.pad(p["fc3_w"].astype(f32).T, ((0, 44), (0, 118)))      # (128, 128)
    fb3 = jnp.pad(p["fc3_b"].astype(f32), (0, 118)).reshape(1, 128)

    return dict(A=A_cat.astype(bf16), cb1=cb1, C=C_cat.astype(bf16), cb2=cb2,
                W1=W1_cat.astype(bf16), fb1=fb1, W2=W2.astype(bf16), fb2=fb2,
                W3=W3.astype(bf16), fb3=fb3)


# ---------------------------------------------------------------------------
# Host-side conv1 row-im2col packing: (2, B_pad*16, 256), rows [dh, b, p*6+t],
# lanes = the 5 needed input rows concatenated (i*28 + w), padded 140 -> 256.
# ---------------------------------------------------------------------------
def _pack_conv1_input(x, b_pad):
    B = x.shape[0]
    x3 = x.reshape(B, 28, 28).astype(jnp.float32)
    if b_pad > B:
        x3 = jnp.pad(x3, ((0, b_pad - B), (0, 0), (0, 0)))
    dh = jnp.arange(2)[:, None, None, None]
    p = jnp.arange(2)[None, :, None, None]
    t = jnp.arange(6)[None, None, :, None]
    i = jnp.arange(5)[None, None, None, :]
    rows = 4 * t + 2 * p + dh + i                       # (2, 2, 6, 5), max 27
    g = x3[:, rows, :]                                  # (B_pad, 2, 2, 6, 5, 28)
    g = jnp.transpose(g, (1, 0, 2, 3, 4, 5))            # (2, B_pad, 2, 6, 5, 28)
    g = g.reshape(2, b_pad, 12, 140)
    g = jnp.pad(g, ((0, 0), (0, 0), (0, 4), (0, 116)))  # rows 12->16, lanes ->256
    return g.reshape(2, b_pad * 16, 256).astype(jnp.bfloat16)


# ---------------------------------------------------------------------------
# Forward pass: one pallas_call, batch-tile grid, everything VMEM resident.
# ---------------------------------------------------------------------------
def net_forward(prep, x):
    B = x.shape[0]
    b_pad = ((B + BT - 1) // BT) * BT
    x1 = _pack_conv1_input(x, b_pad)                    # (2, b_pad*16, 256) bf16

    def const_spec(arr):
        shape = arr.shape
        return pl.BlockSpec(shape, lambda j, _s=shape: tuple(0 for _ in _s))

    out = pl.pallas_call(
        _lenet_kernel,
        out_shape=jax.ShapeDtypeStruct((b_pad, 128), jnp.float32),
        grid=(b_pad // BT,),
        in_specs=[
            pl.BlockSpec((2, BT * 16, 256), lambda j: (0, j, 0)),   # conv1 im2col
            const_spec(prep["A"]), const_spec(prep["cb1"]),
            const_spec(prep["C"]), const_spec(prep["cb2"]),
            const_spec(prep["W1"]), const_spec(prep["fb1"]),
            const_spec(prep["W2"]), const_spec(prep["fb2"]),
            const_spec(prep["W3"]), const_spec(prep["fb3"]),
        ],
        out_specs=pl.BlockSpec((BT, 128), lambda j: (j, 0)),
        compiler_params=pltpu.CompilerParams(dimension_semantics=("parallel",)),
    )(x1, prep["A"], prep["cb1"], prep["C"], prep["cb2"],
      prep["W1"], prep["fb1"], prep["W2"], prep["fb2"], prep["W3"], prep["fb3"])
    return out[:B, :10]


# ---------------------------------------------------------------------------
# Parameters (PyTorch-style init) and a pure-JAX reference for the self-check.
# ---------------------------------------------------------------------------
def init_params(key):
    ks = jax.random.split(key, 10)

    def u(k, shape, fan_in):
        bound = 1.0 / jnp.sqrt(float(fan_in))
        return jax.random.uniform(k, shape, jnp.float32, -bound, bound)

    return {
        "conv1_w": u(ks[0], (6, 1, 5, 5), 1 * 25),
        "conv1_b": u(ks[1], (6,), 1 * 25),
        "conv2_w": u(ks[2], (16, 6, 5, 5), 6 * 25),
        "conv2_b": u(ks[3], (16,), 6 * 25),
        "fc1_w": u(ks[4], (120, 256), 256),
        "fc1_b": u(ks[5], (120,), 256),
        "fc2_w": u(ks[6], (84, 120), 120),
        "fc2_b": u(ks[7], (84,), 120),
        "fc3_w": u(ks[8], (10, 84), 84),
        "fc3_b": u(ks[9], (10,), 84),
    }


def net_reference(params, x):
    def conv(x, w, b):
        y = jax.lax.conv_general_dilated(
            x, w, window_strides=(1, 1), padding="VALID",
            dimension_numbers=("NCHW", "OIHW", "NCHW"))
        return jax.nn.relu(y + b[None, :, None, None])

    def pool(x):
        return jax.lax.reduce_window(
            x, -jnp.inf, jax.lax.max, (1, 1, 2, 2), (1, 1, 2, 2), "VALID")

    x = pool(conv(x, params["conv1_w"], params["conv1_b"]))
    x = pool(conv(x, params["conv2_w"], params["conv2_b"]))
    x = x.reshape(x.shape[0], 256)
    x = jax.nn.relu(x @ params["fc1_w"].T + params["fc1_b"])
    x = jax.nn.relu(x @ params["fc2_w"].T + params["fc2_b"])
    return x @ params["fc3_w"].T + params["fc3_b"]


if __name__ == "__main__":
    key = jax.random.PRNGKey(0)
    pkey, xkey = jax.random.split(key)
    params = init_params(pkey)
    # batch=2, 1 channel, 28x28 — spatial size is forced by fc1 (16*4*4).
    x = jax.random.normal(xkey, (2, 1, 28, 28), jnp.float32)

    prep = prepare_params(params)                 # one-time weight packing
    out = jax.block_until_ready(jax.jit(net_forward)(prep, x))
    assert out.shape == (2, 10) and out.dtype == jnp.float32

    ref = net_reference(params, x)
    # bf16 MXU operands (f32 accumulation) -> relaxed tolerance per review note.
    if not jnp.allclose(out, ref, rtol=5e-2, atol=5e-2):
        raise AssertionError(
            "Pallas output mismatches pure-JAX reference (max abs diff "
            f"{float(jnp.max(jnp.abs(out - ref)))})")
    print("KERNEL_OK")
</pallas_src>

<mosaic_0001>
module attributes {stable_mosaic.version = 11 : i64} {
  func.func @_lenet_kernel(%arg0: i32, %arg1: memref<2x128x256xbf16, #tpu.memory_space<vmem>>, %arg2: memref<256x256xbf16, #tpu.memory_space<vmem>>, %arg3: memref<1x128xf32, #tpu.memory_space<vmem>>, %arg4: memref<640x256xbf16, #tpu.memory_space<vmem>>, %arg5: memref<1x128xf32, #tpu.memory_space<vmem>>, %arg6: memref<512x128xbf16, #tpu.memory_space<vmem>>, %arg7: memref<1x128xf32, #tpu.memory_space<vmem>>, %arg8: memref<128x128xbf16, #tpu.memory_space<vmem>>, %arg9: memref<1x128xf32, #tpu.memory_space<vmem>>, %arg10: memref<128x128xbf16, #tpu.memory_space<vmem>>, %arg11: memref<1x128xf32, #tpu.memory_space<vmem>>, %arg12: memref<8x128xf32, #tpu.memory_space<vmem>>) attributes {dimension_semantics = [#tpu.dimension_semantics<parallel>], iteration_bounds = array<i64: 1>, scalar_prefetch = 0 : i64, scratch_operands = 0 : i64, tpu.core_type = #tpu.core_type<tc>, window_params = [{transform_indices = @transform_0, window_bounds = array<i64: 2, 128, 256>}, {pipeline_mode = #tpu.pipeline_mode<synchronous>, transform_indices = @transform_1, window_bounds = array<i64: 256, 256>}, {pipeline_mode = #tpu.pipeline_mode<synchronous>, transform_indices = @transform_2, window_bounds = array<i64: 1, 128>}, {pipeline_mode = #tpu.pipeline_mode<synchronous>, transform_indices = @transform_3, window_bounds = array<i64: 640, 256>}, {pipeline_mode = #tpu.pipeline_mode<synchronous>, transform_indices = @transform_4, window_bounds = array<i64: 1, 128>}, {pipeline_mode = #tpu.pipeline_mode<synchronous>, transform_indices = @transform_5, window_bounds = array<i64: 512, 128>}, {pipeline_mode = #tpu.pipeline_mode<synchronous>, transform_indices = @transform_6, window_bounds = array<i64: 1, 128>}, {pipeline_mode = #tpu.pipeline_mode<synchronous>, transform_indices = @transform_7, window_bounds = array<i64: 128, 128>}, {pipeline_mode = #tpu.pipeline_mode<synchronous>, transform_indices = @transform_8, window_bounds = array<i64: 1, 128>}, {pipeline_mode = #tpu.pipeline_mode<synchronous>, transform_indices = @transform_9, window_bounds = array<i64: 128, 128>}, {pipeline_mode = #tpu.pipeline_mode<synchronous>, transform_indices = @transform_10, window_bounds = array<i64: 1, 128>}, {transform_indices = @transform_11, window_bounds = array<i64: 8, 128>}]} {
    %c0 = arith.constant 0 : index
    %c0_0 = arith.constant 0 : index
    %c0_1 = arith.constant 0 : index
    %0 = vector.load %arg1[%c0, %c0_0, %c0_1] : memref<2x128x256xbf16, #tpu.memory_space<vmem>>, vector<2x128x256xbf16>
    %1 = vector.shape_cast %0 : vector<2x128x256xbf16> to vector<256x256xbf16>
    %c0_2 = arith.constant 0 : index
    %c0_3 = arith.constant 0 : index
    %2 = vector.load %arg2[%c0_2, %c0_3] : memref<256x256xbf16, #tpu.memory_space<vmem>>, vector<256x256xbf16>
    %cst = arith.constant dense<0.000000e+00> : vector<256x256xf32>
    %3 = tpu.matmul %1, %2, %cst {dimension_numbers = #tpu.dot_dimension_numbers<[1], [0], [0], [1], [0, 0, 1, 1], [], []>} : vector<256x256xbf16>, vector<256x256xbf16>, vector<256x256xf32> -> vector<256x256xf32>
    %4 = vector.extract_strided_slice %3 {offsets = [0, 0], sizes = [128, 256], strides = [1, 1]} : vector<256x256xf32> to vector<128x256xf32>
    %5 = vector.extract_strided_slice %3 {offsets = [128, 0], sizes = [128, 256], strides = [1, 1]} : vector<256x256xf32> to vector<128x256xf32>
    %6 = arith.maximumf %4, %5 : vector<128x256xf32>
    %7 = vector.extract_strided_slice %6 {offsets = [0, 0], sizes = [128, 128], strides = [1, 1]} : vector<128x256xf32> to vector<128x128xf32>
    %8 = vector.extract_strided_slice %6 {offsets = [0, 128], sizes = [128, 128], strides = [1, 1]} : vector<128x256xf32> to vector<128x128xf32>
    %9 = arith.maximumf %7, %8 : vector<128x128xf32>
    %c0_4 = arith.constant 0 : index
    %c0_5 = arith.constant 0 : index
    %10 = vector.load %arg3[%c0_4, %c0_5] : memref<1x128xf32, #tpu.memory_space<vmem>>, vector<1x128xf32>
    %11 = vector.broadcast %10 : vector<1x128xf32> to vector<128x128xf32>
    %12 = arith.addf %9, %11 : vector<128x128xf32>
    %cst_6 = arith.constant 0.000000e+00 : f32
    %13 = vector.broadcast %cst_6 : f32 to vector<128x128xf32>
    %14 = arith.maximumf %12, %13 : vector<128x128xf32>
    %15 = vector.shape_cast %14 : vector<128x128xf32> to vector<8x16x128xf32>
    %16 = vector.extract_strided_slice %15 {offsets = [0, 0, 0], sizes = [8, 4, 128], strides = [1, 1, 1]} : vector<8x16x128xf32> to vector<8x4x128xf32>
    %17 = vector.extract_strided_slice %15 {offsets = [0, 6, 0], sizes = [8, 4, 128], strides = [1, 1, 1]} : vector<8x16x128xf32> to vector<8x4x128xf32>
    %18 = vector.extract_strided_slice %15 {offsets = [0, 1, 0], sizes = [8, 4, 128], strides = [1, 1, 1]} : vector<8x16x128xf32> to vector<8x4x128xf32>
    %19 = vector.extract_strided_slice %15 {offsets = [0, 7, 0], sizes = [8, 4, 128], strides = [1, 1, 1]} : vector<8x16x128xf32> to vector<8x4x128xf32>
    %20 = vector.extract_strided_slice %15 {offsets = [0, 2, 0], sizes = [8, 4, 128], strides = [1, 1, 1]} : vector<8x16x128xf32> to vector<8x4x128xf32>
    %21 = tpu.concatenate %16, %17, %18, %19, %20 in 2 : vector<8x4x128xf32>, vector<8x4x128xf32>, vector<8x4x128xf32>, vector<8x4x128xf32>, vector<8x4x128xf32> -> vector<8x4x640xf32>
    %22 = vector.extract_strided_slice %15 {offsets = [0, 6, 0], sizes = [8, 4, 128], strides = [1, 1, 1]} : vector<8x16x128xf32> to vector<8x4x128xf32>
    %23 = vector.extract_strided_slice %15 {offsets = [0, 1, 0], sizes = [8, 4, 128], strides = [1, 1, 1]} : vector<8x16x128xf32> to vector<8x4x128xf32>
    %24 = vector.extract_strided_slice %15 {offsets = [0, 7, 0], sizes = [8, 4, 128], strides = [1, 1, 1]} : vector<8x16x128xf32> to vector<8x4x128xf32>
    %25 = vector.extract_strided_slice %15 {offsets = [0, 2, 0], sizes = [8, 4, 128], strides = [1, 1, 1]} : vector<8x16x128xf32> to vector<8x4x128xf32>
    %26 = vector.extract_strided_slice %15 {offsets = [0, 8, 0], sizes = [8, 4, 128], strides = [1, 1, 1]} : vector<8x16x128xf32> to vector<8x4x128xf32>
    %27 = tpu.concatenate %22, %23, %24, %25, %26 in 2 : vector<8x4x128xf32>, vector<8x4x128xf32>, vector<8x4x128xf32>, vector<8x4x128xf32>, vector<8x4x128xf32> -> vector<8x4x640xf32>
    %28 = tpu.concatenate %21, %27 in 0 : vector<8x4x640xf32>, vector<8x4x640xf32> -> vector<16x4x640xf32>
    %29 = vector.shape_cast %28 : vector<16x4x640xf32> to vector<64x640xf32>
    %30 = arith.truncf %29 : vector<64x640xf32> to vector<64x640xbf16>
    %c0_7 = arith.constant 0 : index
    %c0_8 = arith.constant 0 : index
    %31 = vector.load %arg4[%c0_7, %c0_8] : memref<640x256xbf16, #tpu.memory_space<vmem>>, vector<640x256xbf16>
    %cst_9 = arith.constant dense<0.000000e+00> : vector<64x256xf32>
    %32 = tpu.matmul %30, %31, %cst_9 {dimension_numbers = #tpu.dot_dimension_numbers<[1], [0], [0], [1], [0, 0, 1, 1], [], []>} : vector<64x640xbf16>, vector<640x256xbf16>, vector<64x256xf32> -> vector<64x256xf32>
    %33 = vector.extract_strided_slice %32 {offsets = [0, 0], sizes = [32, 256], strides = [1, 1]} : vector<64x256xf32> to vector<32x256xf32>
    %34 = vector.extract_strided_slice %32 {offsets = [32, 0], sizes = [32, 256], strides = [1, 1]} : vector<64x256xf32> to vector<32x256xf32>
    %35 = arith.maximumf %33, %34 : vector<32x256xf32>
    %36 = vector.extract_strided_slice %35 {offsets = [0, 0], sizes = [32, 128], strides = [1, 1]} : vector<32x256xf32> to vector<32x128xf32>
    %37 = vector.extract_strided_slice %35 {offsets = [0, 128], sizes = [32, 128], strides = [1, 1]} : vector<32x256xf32> to vector<32x128xf32>
    %38 = arith.maximumf %36, %37 : vector<32x128xf32>
    %c0_10 = arith.constant 0 : index
    %c0_11 = arith.constant 0 : index
    %39 = vector.load %arg5[%c0_10, %c0_11] : memref<1x128xf32, #tpu.memory_space<vmem>>, vector<1x128xf32>
    %40 = vector.broadcast %39 : vector<1x128xf32> to vector<32x128xf32>
    %41 = arith.addf %38, %40 : vector<32x128xf32>
    %cst_12 = arith.constant 0.000000e+00 : f32
    %42 = vector.broadcast %cst_12 : f32 to vector<32x128xf32>
    %43 = arith.maximumf %41, %42 : vector<32x128xf32>
    %44 = arith.truncf %43 : vector<32x128xf32> to vector<32x128xbf16>
    %45 = vector.shape_cast %44 : vector<32x128xbf16> to vector<8x512xbf16>
    %c0_13 = arith.constant 0 : index
    %c0_14 = arith.constant 0 : index
    %46 = vector.load %arg6[%c0_13, %c0_14] : memref<512x128xbf16, #tpu.memory_space<vmem>>, vector<512x128xbf16>
    %cst_15 = arith.constant dense<0.000000e+00> : vector<8x128xf32>
    %47 = tpu.matmul %45, %46, %cst_15 {dimension_numbers = #tpu.dot_dimension_numbers<[1], [0], [0], [1], [0, 0, 1, 1], [], []>} : vector<8x512xbf16>, vector<512x128xbf16>, vector<8x128xf32> -> vector<8x128xf32>
    %c0_16 = arith.constant 0 : index
    %c0_17 = arith.constant 0 : index
    %48 = vector.load %arg7[%c0_16, %c0_17] : memref<1x128xf32, #tpu.memory_space<vmem>>, vector<1x128xf32>
    %49 = vector.broadcast %48 : vector<1x128xf32> to vector<8x128xf32>
    %50 = arith.addf %47, %49 : vector<8x128xf32>
    %cst_18 = arith.constant 0.000000e+00 : f32
    %51 = vector.broadcast %cst_18 : f32 to vector<8x128xf32>
    %52 = arith.maximumf %50, %51 : vector<8x128xf32>
    %53 = arith.truncf %52 : vector<8x128xf32> to vector<8x128xbf16>
    %c0_19 = arith.constant 0 : index
    %c0_20 = arith.constant 0 : index
    %54 = vector.load %arg8[%c0_19, %c0_20] : memref<128x128xbf16, #tpu.memory_space<vmem>>, vector<128x128xbf16>
    %cst_21 = arith.constant dense<0.000000e+00> : vector<8x128xf32>
    %55 = tpu.matmul %53, %54, %cst_21 {dimension_numbers = #tpu.dot_dimension_numbers<[1], [0], [0], [1], [0, 0, 1, 1], [], []>} : vector<8x128xbf16>, vector<128x128xbf16>, vector<8x128xf32> -> vector<8x128xf32>
    %c0_22 = arith.constant 0 : index
    %c0_23 = arith.constant 0 : index
    %56 = vector.load %arg9[%c0_22, %c0_23] : memref<1x128xf32, #tpu.memory_space<vmem>>, vector<1x128xf32>
    %57 = vector.broadcast %56 : vector<1x128xf32> to vector<8x128xf32>
    %58 = arith.addf %55, %57 : vector<8x128xf32>
    %cst_24 = arith.constant 0.000000e+00 : f32
    %59 = vector.broadcast %cst_24 : f32 to vector<8x128xf32>
    %60 = arith.maximumf %58, %59 : vector<8x128xf32>
    %61 = arith.truncf %60 : vector<8x128xf32> to vector<8x128xbf16>
    %c0_25 = arith.constant 0 : index
    %c0_26 = arith.constant 0 : index
    %62 = vector.load %arg10[%c0_25, %c0_26] : memref<128x128xbf16, #tpu.memory_space<vmem>>, vector<128x128xbf16>
    %cst_27 = arith.constant dense<0.000000e+00> : vector<8x128xf32>
    %63 = tpu.matmul %61, %62, %cst_27 {dimension_numbers = #tpu.dot_dimension_numbers<[1], [0], [0], [1], [0, 0, 1, 1], [], []>} : vector<8x128xbf16>, vector<128x128xbf16>, vector<8x128xf32> -> vector<8x128xf32>
    %c0_28 = arith.constant 0 : index
    %c0_29 = arith.constant 0 : index
    %64 = vector.load %arg11[%c0_28, %c0_29] : memref<1x128xf32, #tpu.memory_space<vmem>>, vector<1x128xf32>
    %65 = vector.broadcast %64 : vector<1x128xf32> to vector<8x128xf32>
    %66 = arith.addf %63, %65 : vector<8x128xf32>
    %c0_30 = arith.constant 0 : index
    %c0_31 = arith.constant 0 : index
    %67 = vector.load %arg12[%c0_30, %c0_31] : memref<8x128xf32, #tpu.memory_space<vmem>>, vector<8x128xf32>
    tpu.vector_store %arg12[%c0_30, %c0_31], %66 {strides = array<i32>} : memref<8x128xf32, #tpu.memory_space<vmem>>, vector<8x128xf32>,
    return
  }
  func.func @transform_0(%arg0: i32) -> (i32, i32, i32) {
    %c0_i32 = arith.constant 0 : i32
    %c0_i32_0 = arith.constant 0 : i32
    %c0_i32_1 = arith.constant 0 : i32
    return %c0_i32, %arg0, %c0_i32_0 : i32, i32, i32
  }
  func.func @transform_1(%arg0: i32) -> (i32, i32) {
    %c0_i32 = arith.constant 0 : i32
    %c0_i32_0 = arith.constant 0 : i32
    %c0_i32_1 = arith.constant 0 : i32
    return %c0_i32, %c0_i32_0 : i32, i32
  }
  func.func @transform_2(%arg0: i32) -> (i32, i32) {
    %c0_i32 = arith.constant 0 : i32
    %c0_i32_0 = arith.constant 0 : i32
    %c0_i32_1 = arith.constant 0 : i32
    return %c0_i32, %c0_i32_0 : i32, i32
  }
  func.func @transform_3(%arg0: i32) -> (i32, i32) {
    %c0_i32 = arith.constant 0 : i32
    %c0_i32_0 = arith.constant 0 : i32
    %c0_i32_1 = arith.constant 0 : i32
    return %c0_i32, %c0_i32_0 : i32, i32
  }
  func.func @transform_4(%arg0: i32) -> (i32, i32) {
    %c0_i32 = arith.constant 0 : i32
    %c0_i32_0 = arith.constant 0 : i32
    %c0_i32_1 = arith.constant 0 : i32
    return %c0_i32, %c0_i32_0 : i32, i32
  }
  func.func @transform_5(%arg0: i32) -> (i32, i32) {
    %c0_i32 = arith.constant 0 : i32
    %c0_i32_0 = arith.constant 0 : i32
    %c0_i32_1 = arith.constant 0 : i32
    return %c0_i32, %c0_i32_0 : i32, i32
  }
  func.func @transform_6(%arg0: i32) -> (i32, i32) {
    %c0_i32 = arith.constant 0 : i32
    %c0_i32_0 = arith.constant 0 : i32
    %c0_i32_1 = arith.constant 0 : i32
    return %c0_i32, %c0_i32_0 : i32, i32
  }
  func.func @transform_7(%arg0: i32) -> (i32, i32) {
    %c0_i32 = arith.constant 0 : i32
    %c0_i32_0 = arith.constant 0 : i32
    %c0_i32_1 = arith.constant 0 : i32
    return %c0_i32, %c0_i32_0 : i32, i32
  }
  func.func @transform_8(%arg0: i32) -> (i32, i32) {
    %c0_i32 = arith.constant 0 : i32
    %c0_i32_0 = arith.constant 0 : i32
    %c0_i32_1 = arith.constant 0 : i32
    return %c0_i32, %c0_i32_0 : i32, i32
  }
  func.func @transform_9(%arg0: i32) -> (i32, i32) {
    %c0_i32 = arith.constant 0 : i32
    %c0_i32_0 = arith.constant 0 : i32
    %c0_i32_1 = arith.constant 0 : i32
    return %c0_i32, %c0_i32_0 : i32, i32
  }
  func.func @transform_10(%arg0: i32) -> (i32, i32) {
    %c0_i32 = arith.constant 0 : i32
    %c0_i32_0 = arith.constant 0 : i32
    %c0_i32_1 = arith.constant 0 : i32
    return %c0_i32, %c0_i32_0 : i32, i32
  }
  func.func @transform_11(%arg0: i32) -> (i32, i32) {
    %c0_i32 = arith.constant 0 : i32
    %c0_i32_0 = arith.constant 0 : i32
    return %arg0, %c0_i32 : i32, i32
  }
}

</mosaic_0001>

<llo_original>
// kernel: net_forward.1
$region0: #{net_forward.1}
  #allocation0 [shape = 'u32[]', space=smem, size = 0x4, offset = 0x4, fixed_abs, tag = 'smem constant byte address 0x4 - core index']
  #allocation1 [shape = 'u32[144,128]{1,0:T(1,128)}', space=vmem, size = 0x12000, scoped, tag = 'internal scratch']
  %s0 = inlined_call_operand.vmem [shape: bf16[2,128,256], index: 0, kind: input, shape index: {}]
  %s1 = inlined_call_operand.vmem [shape: bf16[256,256], index: 1, kind: input, shape index: {}]
  %s2 = inlined_call_operand.vmem [shape: f32[1,128], index: 2, kind: input, shape index: {}]
  %s3 = inlined_call_operand.vmem [shape: bf16[640,256], index: 3, kind: input, shape index: {}]
  %s4 = inlined_call_operand.vmem [shape: f32[1,128], index: 4, kind: input, shape index: {}]
  %s5 = inlined_call_operand.vmem [shape: bf16[512,128], index: 5, kind: input, shape index: {}]
  %s6 = inlined_call_operand.vmem [shape: f32[1,128], index: 6, kind: input, shape index: {}]
  %s7 = inlined_call_operand.vmem [shape: bf16[128,128], index: 7, kind: input, shape index: {}]
  %s8 = inlined_call_operand.vmem [shape: f32[1,128], index: 8, kind: input, shape index: {}]
  %s9 = inlined_call_operand.vmem [shape: bf16[128,128], index: 9, kind: input, shape index: {}]
  %s10 = inlined_call_operand.vmem [shape: f32[1,128], index: 10, kind: input, shape index: {}]
  %s11 = inlined_call_operand.vmem [shape: f32[8,128], index: 11, kind: output, shape index: {}]
  %s12 = sld [smem:[#allocation0]]
  $region54: #{net_forward.1} parent=0
    _
  %s14 = ssub.s32 1, %s12
  %s15 = scalar_select 0, %s14, %s12
  // Predicated region
  $region2: #{net_forward.1} parent=0 // pred_check
    _
  $region3: #{net_forward.1} parent=0 // pred_check_branch
    %17 = sbr.rel (0) target = $region5
  $region4: #{net_forward.1} parent=0 // pred_region
    _
  $region5: #{net_forward.1} parent=0 // pred_fallthru
    _
  // Predicated region
  $region6: #{net_forward.1} parent=0 // pred_check
    _
  $region7: #{net_forward.1} parent=0 // pred_check_branch
    %19 = sbr.rel (0) target = $region9
  $region8: #{net_forward.1} parent=0 // pred_region
    _
  $region9: #{net_forward.1} parent=0 // pred_fallthru
    _
  // Predicated region
  $region10: #{net_forward.1} parent=0 // pred_check
    _
  $region11: #{net_forward.1} parent=0 // pred_check_branch
    %21 = sbr.rel (0) target = $region13
  $region12: #{net_forward.1} parent=0 // pred_region
    _
  $region13: #{net_forward.1} parent=0 // pred_fallthru
    _
  // Predicated region
  $region14: #{net_forward.1} parent=0 // pred_check
    _
  $region15: #{net_forward.1} parent=0 // pred_check_branch
    %23 = sbr.rel (0) target = $region17
  $region16: #{net_forward.1} parent=0 // pred_region
    _
  $region17: #{net_forward.1} parent=0 // pred_fallthru
    _
  // Predicated region
  $region18: #{net_forward.1} parent=0 // pred_check
    _
  $region19: #{net_forward.1} parent=0 // pred_check_branch
    %25 = sbr.rel (0) target = $region21
  $region20: #{net_forward.1} parent=0 // pred_region
    _
  $region21: #{net_forward.1} parent=0 // pred_fallthru
    _
  // Predicated region
  $region22: #{net_forward.1} parent=0 // pred_check
    _
  $region23: #{net_forward.1} parent=0 // pred_check_branch
    %27 = sbr.rel (0) target = $region25
  $region24: #{net_forward.1} parent=0 // pred_region
    _
  $region25: #{net_forward.1} parent=0 // pred_fallthru
    _
  // Predicated region
  $region26: #{net_forward.1} parent=0 // pred_check
    _
  $region27: #{net_forward.1} parent=0 // pred_check_branch
    %29 = sbr.rel (0) target = $region29
  $region28: #{net_forward.1} parent=0 // pred_region
    _
  $region29: #{net_forward.1} parent=0 // pred_fallthru
    _
  // Predicated region
  $region30: #{net_forward.1} parent=0 // pred_check
    _
  $region31: #{net_forward.1} parent=0 // pred_check_branch
    %31 = sbr.rel (0) target = $region33
  $region32: #{net_forward.1} parent=0 // pred_region
    _
  $region33: #{net_forward.1} parent=0 // pred_fallthru
    _
  // Predicated region
  $region34: #{net_forward.1} parent=0 // pred_check
    _
  $region35: #{net_forward.1} parent=0 // pred_check_branch
    %33 = sbr.rel (0) target = $region37
  $region36: #{net_forward.1} parent=0 // pred_region
    _
  $region37: #{net_forward.1} parent=0 // pred_fallthru
    _
  // Predicated region
  $region38: #{net_forward.1} parent=0 // pred_check
    _
  $region39: #{net_forward.1} parent=0 // pred_check_branch
    %35 = sbr.rel (0) target = $region41
  $region40: #{net_forward.1} parent=0 // pred_region
    _
  $region41: #{net_forward.1} parent=0 // pred_fallthru
    _
  // Predicated region
  $region42: #{net_forward.1} parent=0 // pred_check
    _
  $region43: #{net_forward.1} parent=0 // pred_check_branch
    %37 = sbr.rel (0) target = $region45
  $region44: #{net_forward.1} parent=0 // pred_region
    _
  $region45: #{net_forward.1} parent=0 // pred_fallthru
    _
  %v39 = vld [vmem:[%s0] sm:$0xff]
  %v40 = vld [vmem:[%s0 + $0x8] sm:$0xff]
  %v41 = vld [vmem:[%s0 + $0x10] sm:$0xff]
  %v42 = vld [vmem:[%s0 + $0x18] sm:$0xff]
  %v43 = vld [vmem:[%s0 + $0x20] sm:$0xff]
  %v44 = vld [vmem:[%s0 + $0x28] sm:$0xff]
  %v45 = vld [vmem:[%s0 + $0x30] sm:$0xff]
  %v46 = vld [vmem:[%s0 + $0x38] sm:$0xff]
  %v47 = vld [vmem:[%s0 + $0x40] sm:$0xff]
  %v48 = vld [vmem:[%s0 + $0x48] sm:$0xff]
  %v49 = vld [vmem:[%s0 + $0x50] sm:$0xff]
  %v50 = vld [vmem:[%s0 + $0x58] sm:$0xff]
  %v51 = vld [vmem:[%s0 + $0x60] sm:$0xff]
  %v52 = vld [vmem:[%s0 + $0x68] sm:$0xff]
  %v53 = vld [vmem:[%s0 + $0x70] sm:$0xff]
  %v54 = vld [vmem:[%s0 + $0x78] sm:$0xff]
  %v55 = vld [vmem:[%s0 + $0x80] sm:$0xff]
  %v56 = vld [vmem:[%s0 + $0x88] sm:$0xff]
  %v57 = vld [vmem:[%s0 + $0x90] sm:$0xff]
  %v58 = vld [vmem:[%s0 + $0x98] sm:$0xff]
  %v59 = vld [vmem:[%s0 + $0xa0] sm:$0xff]
  %v60 = vld [vmem:[%s0 + $0xa8] sm:$0xff]
  %v61 = vld [vmem:[%s0 + $0xb0] sm:$0xff]
  %v62 = vld [vmem:[%s0 + $0xb8] sm:$0xff]
  %v63 = vld [vmem:[%s0 + $0xc0] sm:$0xff]
  %v64 = vld [vmem:[%s0 + $0xc8] sm:$0xff]
  %v65 = vld [vmem:[%s0 + $0xd0] sm:$0xff]
  %v66 = vld [vmem:[%s0 + $0xd8] sm:$0xff]
  %v67 = vld [vmem:[%s0 + $0xe0] sm:$0xff]
  %v68 = vld [vmem:[%s0 + $0xe8] sm:$0xff]
  %v69 = vld [vmem:[%s0 + $0xf0] sm:$0xff]
  %v70 = vld [vmem:[%s0 + $0xf8] sm:$0xff]
  %v71 = vld [vmem:[%s1] sm:$0xff]
  %v72 = vld [vmem:[%s1 + $0x8] sm:$0xff]
  %v73 = vld [vmem:[%s1 + $0x10] sm:$0xff]
  %v74 = vld [vmem:[%s1 + $0x18] sm:$0xff]
  %v75 = vld [vmem:[%s1 + $0x20] sm:$0xff]
  %v76 = vld [vmem:[%s1 + $0x28] sm:$0xff]
  %v77 = vld [vmem:[%s1 + $0x30] sm:$0xff]
  %v78 = vld [vmem:[%s1 + $0x38] sm:$0xff]
  %v79 = vld [vmem:[%s1 + $0x40] sm:$0xff]
  %v80 = vld [vmem:[%s1 + $0x48] sm:$0xff]
  %v81 = vld [vmem:[%s1 + $0x50] sm:$0xff]
  %v82 = vld [vmem:[%s1 + $0x58] sm:$0xff]
  %v83 = vld [vmem:[%s1 + $0x60] sm:$0xff]
  %v84 = vld [vmem:[%s1 + $0x68] sm:$0xff]
  %v85 = vld [vmem:[%s1 + $0x70] sm:$0xff]
  %v86 = vld [vmem:[%s1 + $0x78] sm:$0xff]
  %v87 = vld [vmem:[%s1 + $0x80] sm:$0xff]
  %v88 = vld [vmem:[%s1 + $0x88] sm:$0xff]
  %v89 = vld [vmem:[%s1 + $0x90] sm:$0xff]
  %v90 = vld [vmem:[%s1 + $0x98] sm:$0xff]
  %v91 = vld [vmem:[%s1 + $0xa0] sm:$0xff]
  %v92 = vld [vmem:[%s1 + $0xa8] sm:$0xff]
  %v93 = vld [vmem:[%s1 + $0xb0] sm:$0xff]
  %v94 = vld [vmem:[%s1 + $0xb8] sm:$0xff]
  %v95 = vld [vmem:[%s1 + $0xc0] sm:$0xff]
  %v96 = vld [vmem:[%s1 + $0xc8] sm:$0xff]
  %v97 = vld [vmem:[%s1 + $0xd0] sm:$0xff]
  %v98 = vld [vmem:[%s1 + $0xd8] sm:$0xff]
  %v99 = vld [vmem:[%s1 + $0xe0] sm:$0xff]
  %v100 = vld [vmem:[%s1 + $0xe8] sm:$0xff]
  %v101 = vld [vmem:[%s1 + $0xf0] sm:$0xff]
  %v102 = vld [vmem:[%s1 + $0xf8] sm:$0xff]
  %v135 = vunpack.c.l.b16 %v39
  %v136 = vunpack.c.h.b16 %v39
  %v137 = vunpack.c.l.b16 %v40
  %v138 = vunpack.c.h.b16 %v40
  %v139 = vunpack.c.l.b16 %v41
  %v140 = vunpack.c.h.b16 %v41
  %v141 = vunpack.c.l.b16 %v42
  %v142 = vunpack.c.h.b16 %v42
  %v143 = vunpack.c.l.b16 %v43
  %v144 = vunpack.c.h.b16 %v43
  %v145 = vunpack.c.l.b16 %v44
  %v146 = vunpack.c.h.b16 %v44
  %v147 = vunpack.c.l.b16 %v45
  %v148 = vunpack.c.h.b16 %v45
  %v149 = vunpack.c.l.b16 %v46
  %v150 = vunpack.c.h.b16 %v46
  %v151 = vunpack.c.l.b16 %v47
  %v152 = vunpack.c.h.b16 %v47
  %v153 = vunpack.c.l.b16 %v48
  %v154 = vunpack.c.h.b16 %v48
  %v155 = vunpack.c.l.b16 %v49
  %v156 = vunpack.c.h.b16 %v49
  %v157 = vunpack.c.l.b16 %v50
  %v158 = vunpack.c.h.b16 %v50
  %v159 = vunpack.c.l.b16 %v51
  %v160 = vunpack.c.h.b16 %v51
  %v161 = vunpack.c.l.b16 %v52
  %v162 = vunpack.c.h.b16 %v52
  %v163 = vunpack.c.l.b16 %v53
  %v164 = vunpack.c.h.b16 %v53
  %v165 = vunpack.c.l.b16 %v54
  %v166 = vunpack.c.h.b16 %v54
  %v167 = vunpack.c.l.b16 %v55
  %v168 = vunpack.c.h.b16 %v55
  %v169 = vunpack.c.l.b16 %v56
  %v170 = vunpack.c.h.b16 %v56
  %v171 = vunpack.c.l.b16 %v57
  %v172 = vunpack.c.h.b16 %v57
  %v173 = vunpack.c.l.b16 %v58
  %v174 = vunpack.c.h.b16 %v58
  %v175 = vunpack.c.l.b16 %v59
  %v176 = vunpack.c.h.b16 %v59
  %v177 = vunpack.c.l.b16 %v60
  %v178 = vunpack.c.h.b16 %v60
  %v179 = vunpack.c.l.b16 %v61
  %v180 = vunpack.c.h.b16 %v61
  %v181 = vunpack.c.l.b16 %v62
  %v182 = vunpack.c.h.b16 %v62
  %v183 = vunpack.c.l.b16 %v63
  %v184 = vunpack.c.h.b16 %v63
  %v185 = vunpack.c.l.b16 %v64
  %v186 = vunpack.c.h.b16 %v64
  %v187 = vunpack.c.l.b16 %v65
  %v188 = vunpack.c.h.b16 %v65
  %v189 = vunpack.c.l.b16 %v66
  %v190 = vunpack.c.h.b16 %v66
  %v191 = vunpack.c.l.b16 %v67
  %v192 = vunpack.c.h.b16 %v67
  %v193 = vunpack.c.l.b16 %v68
  %v194 = vunpack.c.h.b16 %v68
  %v195 = vunpack.c.l.b16 %v69
  %v196 = vunpack.c.h.b16 %v69
  %v197 = vunpack.c.l.b16 %v70
  %v198 = vunpack.c.h.b16 %v70
  %v199 = vpack.c.b16 %v137, %v135
  %v200 = vpack.c.b16 %v138, %v136
  %v201 = vpack.c.b16 %v141, %v139
  %v202 = vpack.c.b16 %v142, %v140
  %v203 = vpack.c.b16 %v145, %v143
  %v204 = vpack.c.b16 %v146, %v144
  %v205 = vpack.c.b16 %v149, %v147
  %v206 = vpack.c.b16 %v150, %v148
  %v207 = vpack.c.b16 %v153, %v151
  %v208 = vpack.c.b16 %v154, %v152
  %v209 = vpack.c.b16 %v157, %v155
  %v210 = vpack.c.b16 %v158, %v156
  %v211 = vpack.c.b16 %v161, %v159
  %v212 = vpack.c.b16 %v162, %v160
  %v213 = vpack.c.b16 %v165, %v163
  %v214 = vpack.c.b16 %v166, %v164
  %v215 = vpack.c.b16 %v169, %v167
  %v216 = vpack.c.b16 %v170, %v168
  %v217 = vpack.c.b16 %v173, %v171
  %v218 = vpack.c.b16 %v174, %v172
  %v219 = vpack.c.b16 %v177, %v175
  %v220 = vpack.c.b16 %v178, %v176
  %v221 = vpack.c.b16 %v181, %v179
  %v222 = vpack.c.b16 %v182, %v180
  %v223 = vpack.c.b16 %v185, %v183
  %v224 = vpack.c.b16 %v186, %v184
  %v225 = vpack.c.b16 %v189, %v187
  %v226 = vpack.c.b16 %v190, %v188
  %v227 = vpack.c.b16 %v193, %v191
  %v228 = vpack.c.b16 %v194, %v192
  %v229 = vpack.c.b16 %v197, %v195
  %v230 = vpack.c.b16 %v198, %v196
  %v295 = vunpack.c.l.b16 %v71
  %v296 = vunpack.c.h.b16 %v71
  %v297 = vunpack.c.l.b16 %v72
  %v298 = vunpack.c.h.b16 %v72
  %v299 = vunpack.c.l.b16 %v73
  %v300 = vunpack.c.h.b16 %v73
  %v301 = vunpack.c.l.b16 %v74
  %v302 = vunpack.c.h.b16 %v74
  %v303 = vunpack.c.l.b16 %v75
  %v304 = vunpack.c.h.b16 %v75
  %v305 = vunpack.c.l.b16 %v76
  %v306 = vunpack.c.h.b16 %v76
  %v307 = vunpack.c.l.b16 %v77
  %v308 = vunpack.c.h.b16 %v77
  %v309 = vunpack.c.l.b16 %v78
  %v310 = vunpack.c.h.b16 %v78
  %v311 = vunpack.c.l.b16 %v79
  %v312 = vunpack.c.h.b16 %v79
  %v313 = vunpack.c.l.b16 %v80
  %v314 = vunpack.c.h.b16 %v80
  %v315 = vunpack.c.l.b16 %v81
  %v316 = vunpack.c.h.b16 %v81
  %v317 = vunpack.c.l.b16 %v82
  %v318 = vunpack.c.h.b16 %v82
  %v319 = vunpack.c.l.b16 %v83
  %v320 = vunpack.c.h.b16 %v83
  %v321 = vunpack.c.l.b16 %v84
  %v322 = vunpack.c.h.b16 %v84
  %v323 = vunpack.c.l.b16 %v85
  %v324 = vunpack.c.h.b16 %v85
  %v325 = vunpack.c.l.b16 %v86
  %v326 = vunpack.c.h.b16 %v86
  %v327 = vunpack.c.l.b16 %v87
  %v328 = vunpack.c.h.b16 %v87
  %v329 = vunpack.c.l.b16 %v88
  %v330 = vunpack.c.h.b16 %v88
  %v331 = vunpack.c.l.b16 %v89
  %v332 = vunpack.c.h.b16 %v89
  %v333 = vunpack.c.l.b16 %v90
  %v334 = vunpack.c.h.b16 %v90
  %v335 = vunpack.c.l.b16 %v91
  %v336 = vunpack.c.h.b16 %v91
  %v337 = vunpack.c.l.b16 %v92
  %v338 = vunpack.c.h.b16 %v92
  %v339 = vunpack.c.l.b16 %v93
  %v340 = vunpack.c.h.b16 %v93
  %v341 = vunpack.c.l.b16 %v94
  %v342 = vunpack.c.h.b16 %v94
  %v343 = vunpack.c.l.b16 %v95
  %v344 = vunpack.c.h.b16 %v95
  %v345 = vunpack.c.l.b16 %v96
  %v346 = vunpack.c.h.b16 %v96
  %v347 = vunpack.c.l.b16 %v97
  %v348 = vunpack.c.h.b16 %v97
  %v349 = vunpack.c.l.b16 %v98
  %v350 = vunpack.c.h.b16 %v98
  %v351 = vunpack.c.l.b16 %v99
  %v352 = vunpack.c.h.b16 %v99
  %v353 = vunpack.c.l.b16 %v100
  %v354 = vunpack.c.h.b16 %v100
  %v355 = vunpack.c.l.b16 %v101
  %v356 = vunpack.c.h.b16 %v101
  %v357 = vunpack.c.l.b16 %v102
  %v358 = vunpack.c.h.b16 %v102
  %v359 = vpack.c.b16 %v297, %v295
  %v360 = vpack.c.b16 %v298, %v296
  %v361 = vpack.c.b16 %v301, %v299
  %v362 = vpack.c.b16 %v302, %v300
  %v363 = vpack.c.b16 %v305, %v303
  %v364 = vpack.c.b16 %v306, %v304
  %v365 = vpack.c.b16 %v309, %v307
  %v366 = vpack.c.b16 %v310, %v308
  %v367 = vpack.c.b16 %v313, %v311
  %v368 = vpack.c.b16 %v314, %v312
  %v369 = vpack.c.b16 %v317, %v315
  %v370 = vpack.c.b16 %v318, %v316
  %v371 = vpack.c.b16 %v321, %v319
  %v372 = vpack.c.b16 %v322, %v320
  %v373 = vpack.c.b16 %v325, %v323
  %v374 = vpack.c.b16 %v326, %v324
  %v375 = vpack.c.b16 %v329, %v327
  %v376 = vpack.c.b16 %v330, %v328
  %v377 = vpack.c.b16 %v333, %v331
  %v378 = vpack.c.b16 %v334, %v332
  %v379 = vpack.c.b16 %v337, %v335
  %v380 = vpack.c.b16 %v338, %v336
  %v381 = vpack.c.b16 %v341, %v339
  %v382 = vpack.c.b16 %v342, %v340
  %v383 = vpack.c.b16 %v345, %v343
  %v384 = vpack.c.b16 %v346, %v344
  %v385 = vpack.c.b16 %v349, %v347
  %v386 = vpack.c.b16 %v350, %v348
  %v387 = vpack.c.b16 %v353, %v351
  %v388 = vpack.c.b16 %v354, %v352
  %v389 = vpack.c.b16 %v357, %v355
  %v390 = vpack.c.b16 %v358, %v356
  %423 = vmatprep.subr.bf16.mxu0 %v360
  %424 = vmatpush1.bf16.msra.mxu0 %v359
  %425 = vmatprep.subr.bf16.mxu0 %v362
  %426 = vmatpush1.bf16.msra.mxu0 %v361
  %427 = vmatprep.subr.bf16.mxu0 %v364
  %428 = vmatpush1.bf16.msra.mxu0 %v363
  %429 = vmatprep.subr.bf16.mxu0 %v366
  %430 = vmatpush1.bf16.msra.mxu0 %v365
  %431 = vmatprep.subr.bf16.mxu0 %v368
  %432 = vmatpush1.bf16.msra.mxu0 %v367
  %433 = vmatprep.subr.bf16.mxu0 %v370
  %434 = vmatpush1.bf16.msra.mxu0 %v369
  %435 = vmatprep.subr.bf16.mxu0 %v372
  %436 = vmatpush1.bf16.msra.mxu0 %v371
  %437 = vmatprep.subr.bf16.mxu0 %v374
  %438 = vmatpush1.bf16.msra.mxu0 %v373
  %439 = vmatprep.subr.bf16.mxu0 %v376
  %440 = vmatpush1.bf16.msra.mxu0 %v375
  %441 = vmatprep.subr.bf16.mxu0 %v378
  %442 = vmatpush1.bf16.msra.mxu0 %v377
  %443 = vmatprep.subr.bf16.mxu0 %v380
  %444 = vmatpush1.bf16.msra.mxu0 %v379
  %445 = vmatprep.subr.bf16.mxu0 %v382
  %446 = vmatpush1.bf16.msra.mxu0 %v381
  %447 = vmatprep.subr.bf16.mxu0 %v384
  %448 = vmatpush1.bf16.msra.mxu0 %v383
  %449 = vmatprep.subr.bf16.mxu0 %v386
  %450 = vmatpush1.bf16.msra.mxu0 %v385
  %451 = vmatprep.subr.bf16.mxu0 %v388
  %452 = vmatpush1.bf16.msra.mxu0 %v387
  %453 = vmatprep.subr.bf16.mxu0 %v390
  %454 = vmatpush1.bf16.msra.mxu0 %v389
  %455 = vmatprep.mubr.bf16.mxu0 %v200
  %456 = vmatmul.mubr.bf16.gmra.mrb[0].mxu0 %v199
  %v457 = vpop.f32.mrb[0].mxu0
  %v458 = vadd.f32 0.0, %v457
  %v459 = vpop.f32.mrb[0].mxu0
  %v460 = vadd.f32 0.0, %v459
  %v461 = vpop.f32.mrb[0].mxu0
  %v462 = vadd.f32 0.0, %v461
  %v463 = vpop.f32.mrb[0].mxu0
  %v464 = vadd.f32 0.0, %v463
  %465 = vmatprep.mubr.bf16.mxu0 %v202
  %466 = vmatmul.mubr.bf16.gmra.mrb[0].mxu0 %v201
  %v467 = vpop.f32.mrb[0].mxu0
  %v468 = vadd.f32 0.0, %v467
  %v469 = vpop.f32.mrb[0].mxu0
  %v470 = vadd.f32 0.0, %v469
  %v471 = vpop.f32.mrb[0].mxu0
  %v472 = vadd.f32 0.0, %v471
  %v473 = vpop.f32.mrb[0].mxu0
  %v474 = vadd.f32 0.0, %v473
  %475 = vmatprep.mubr.bf16.mxu0 %v204
  %476 = vmatmul.mubr.bf16.gmra.mrb[0].mxu0 %v203
  %v477 = vpop.f32.mrb[0].mxu0
  %v478 = vadd.f32 0.0, %v477
  %v479 = vpop.f32.mrb[0].mxu0
  %v480 = vadd.f32 0.0, %v479
  %v481 = vpop.f32.mrb[0].mxu0
  %v482 = vadd.f32 0.0, %v481
  %v483 = vpop.f32.mrb[0].mxu0
  %v484 = vadd.f32 0.0, %v483
  %485 = vmatprep.mubr.bf16.mxu0 %v206
  %486 = vmatmul.mubr.bf16.gmra.mrb[0].mxu0 %v205
  %v487 = vpop.f32.mrb[0].mxu0
  %v488 = vadd.f32 0.0, %v487
  %v489 = vpop.f32.mrb[0].mxu0
  %v490 = vadd.f32 0.0, %v489
  %v491 = vpop.f32.mrb[0].mxu0
  %v492 = vadd.f32 0.0, %v491
  %v493 = vpop.f32.mrb[0].mxu0
  %v494 = vadd.f32 0.0, %v493
  %495 = vmatprep.mubr.bf16.mxu0 %v208
  %496 = vmatmul.mubr.bf16.gmra.mrb[0].mxu0 %v207
  %v497 = vpop.f32.mrb[0].mxu0
  %v498 = vadd.f32 0.0, %v497
  %v499 = vpop.f32.mrb[0].mxu0
  %v500 = vadd.f32 0.0, %v499
  %v501 = vpop.f32.mrb[0].mxu0
  %v502 = vadd.f32 0.0, %v501
  %v503 = vpop.f32.mrb[0].mxu0
  %v504 = vadd.f32 0.0, %v503
  %505 = vmatprep.mubr.bf16.mxu0 %v210
  %506 = vmatmul.mubr.bf16.gmra.mrb[0].mxu0 %v209
  %v507 = vpop.f32.mrb[0].mxu0
  %v508 = vadd.f32 0.0, %v507
  %v509 = vpop.f32.mrb[0].mxu0
  %v510 = vadd.f32 0.0, %v509
  %v511 = vpop.f32.mrb[0].mxu0
  %v512 = vadd.f32 0.0, %v511
  %v513 = vpop.f32.mrb[0].mxu0
  %v514 = vadd.f32 0.0, %v513
  %515 = vmatprep.mubr.bf16.mxu0 %v212
  %516 = vmatmul.mubr.bf16.gmra.mrb[0].mxu0 %v211
  %v517 = vpop.f32.mrb[0].mxu0
  %v518 = vadd.f32 0.0, %v517
  %v519 = vpop.f32.mrb[0].mxu0
  %v520 = vadd.f32 0.0, %v519
  %v521 = vpop.f32.mrb[0].mxu0
  %v522 = vadd.f32 0.0, %v521
  %v523 = vpop.f32.mrb[0].mxu0
  %v524 = vadd.f32 0.0, %v523
  %525 = vmatprep.mubr.bf16.mxu0 %v214
  %526 = vmatmul.mubr.bf16.gmra.mrb[0].mxu0 %v213
  %v527 = vpop.f32.mrb[0].mxu0
  %v528 = vadd.f32 0.0, %v527
  %v529 = vpop.f32.mrb[0].mxu0
  %v530 = vadd.f32 0.0, %v529
  %v531 = vpop.f32.mrb[0].mxu0
  %v532 = vadd.f32 0.0, %v531
  %v533 = vpop.f32.mrb[0].mxu0
  %v534 = vadd.f32 0.0, %v533
  %535 = vmatprep.mubr.bf16.mxu0 %v216
  %536 = vmatmul.mubr.bf16.gmra.mrb[0].mxu0 %v215
  %v537 = vpop.f32.mrb[0].mxu0
  %v538 = vadd.f32 0.0, %v537
  %v539 = vpop.f32.mrb[0].mxu0
  %v540 = vadd.f32 0.0, %v539
  %v541 = vpop.f32.mrb[0].mxu0
  %v542 = vadd.f32 0.0, %v541
  %v543 = vpop.f32.mrb[0].mxu0
  %v544 = vadd.f32 0.0, %v543
  %545 = vmatprep.mubr.bf16.mxu0 %v218
  %546 = vmatmul.mubr.bf16.gmra.mrb[0].mxu0 %v217
  %v547 = vpop.f32.mrb[0].mxu0
  %v548 = vadd.f32 0.0, %v547
  %v549 = vpop.f32.mrb[0].mxu0
  %v550 = vadd.f32 0.0, %v549
  %v551 = vpop.f32.mrb[0].mxu0
  %v552 = vadd.f32 0.0, %v551
  %v553 = vpop.f32.mrb[0].mxu0
  %v554 = vadd.f32 0.0, %v553
  %555 = vmatprep.mubr.bf16.mxu0 %v220
  %556 = vmatmul.mubr.bf16.gmra.mrb[0].mxu0 %v219
  %v557 = vpop.f32.mrb[0].mxu0
  %v558 = vadd.f32 0.0, %v557
  %v559 = vpop.f32.mrb[0].mxu0
  %v560 = vadd.f32 0.0, %v559
  %v561 = vpop.f32.mrb[0].mxu0
  %v562 = vadd.f32 0.0, %v561
  %v563 = vpop.f32.mrb[0].mxu0
  %v564 = vadd.f32 0.0, %v563
  %565 = vmatprep.mubr.bf16.mxu0 %v222
  %566 = vmatmul.mubr.bf16.gmra.mrb[0].mxu0 %v221
  %v567 = vpop.f32.mrb[0].mxu0
  %v568 = vadd.f32 0.0, %v567
  %v569 = vpop.f32.mrb[0].mxu0
  %v570 = vadd.f32 0.0, %v569
  %v571 = vpop.f32.mrb[0].mxu0
  %v572 = vadd.f32 0.0, %v571
  %v573 = vpop.f32.mrb[0].mxu0
  %v574 = vadd.f32 0.0, %v573
  %575 = vmatprep.mubr.bf16.mxu0 %v224
  %576 = vmatmul.mubr.bf16.gmra.mrb[0].mxu0 %v223
  %v577 = vpop.f32.mrb[0].mxu0
  %v578 = vadd.f32 0.0, %v577
  %v579 = vpop.f32.mrb[0].mxu0
  %v580 = vadd.f32 0.0, %v579
  %v581 = vpop.f32.mrb[0].mxu0
  %v582 = vadd.f32 0.0, %v581
  %v583 = vpop.f32.mrb[0].mxu0
  %v584 = vadd.f32 0.0, %v583
  %585 = vmatprep.mubr.bf16.mxu0 %v226
  %586 = vmatmul.mubr.bf16.gmra.mrb[0].mxu0 %v225
  %v587 = vpop.f32.mrb[0].mxu0
  %v588 = vadd.f32 0.0, %v587
  %v589 = vpop.f32.mrb[0].mxu0
  %v590 = vadd.f32 0.0, %v589
  %v591 = vpop.f32.mrb[0].mxu0
  %v592 = vadd.f32 0.0, %v591
  %v593 = vpop.f32.mrb[0].mxu0
  %v594 = vadd.f32 0.0, %v593
  %595 = vmatprep.mubr.bf16.mxu0 %v228
  %596 = vmatmul.mubr.bf16.gmra.mrb[0].mxu0 %v227
  %v597 = vpop.f32.mrb[0].mxu0
  %v598 = vadd.f32 0.0, %v597
  %v599 = vpop.f32.mrb[0].mxu0
  %v600 = vadd.f32 0.0, %v599
  %v601 = vpop.f32.mrb[0].mxu0
  %v602 = vadd.f32 0.0, %v601
  %v603 = vpop.f32.mrb[0].mxu0
  %v604 = vadd.f32 0.0, %v603
  %605 = vmatprep.mubr.bf16.mxu0 %v230
  %606 = vmatmul.mubr.bf16.gmra.mrb[0].mxu0 %v229
  %v607 = vpop.f32.mrb[0].mxu0
  %v608 = vadd.f32 0.0, %v607
  %v609 = vpop.f32.mrb[0].mxu0
  %v610 = vadd.f32 0.0, %v609
  %v611 = vpop.f32.mrb[0].mxu0
  %v612 = vadd.f32 0.0, %v611
  %v613 = vpop.f32.mrb[0].mxu0
  %v614 = vadd.f32 0.0, %v613
  %615 = vdwg.mxu0
  %v616 = vmax.f32 %v458, %v538
  %v617 = vmax.f32 %v460, %v540
  %v618 = vmax.f32 %v462, %v542
  %v619 = vmax.f32 %v464, %v544
  %v620 = vmax.f32 %v468, %v548
  %v621 = vmax.f32 %v470, %v550
  %v622 = vmax.f32 %v472, %v552
  %v623 = vmax.f32 %v474, %v554
  %v624 = vmax.f32 %v478, %v558
  %v625 = vmax.f32 %v480, %v560
  %v626 = vmax.f32 %v482, %v562
  %v627 = vmax.f32 %v484, %v564
  %v628 = vmax.f32 %v488, %v568
  %v629 = vmax.f32 %v490, %v570
  %v630 = vmax.f32 %v492, %v572
  %v631 = vmax.f32 %v494, %v574
  %v632 = vmax.f32 %v498, %v578
  %v633 = vmax.f32 %v500, %v580
  %v634 = vmax.f32 %v502, %v582
  %v635 = vmax.f32 %v504, %v584
  %v636 = vmax.f32 %v508, %v588
  %v637 = vmax.f32 %v510, %v590
  %v638 = vmax.f32 %v512, %v592
  %v639 = vmax.f32 %v514, %v594
  %v640 = vmax.f32 %v518, %v598
  %v641 = vmax.f32 %v520, %v600
  %v642 = vmax.f32 %v522, %v602
  %v643 = vmax.f32 %v524, %v604
  %v644 = vmax.f32 %v528, %v608
  %v645 = vmax.f32 %v530, %v610
  %v646 = vmax.f32 %v532, %v612
  %v647 = vmax.f32 %v534, %v614
  %v648 = vmax.f32 %v616, %v617
  %v649 = vmax.f32 %v618, %v619
  %v650 = vmax.f32 %v620, %v621
  %v651 = vmax.f32 %v622, %v623
  %v652 = vmax.f32 %v624, %v625
  %v653 = vmax.f32 %v626, %v627
  %v654 = vmax.f32 %v628, %v629
  %v655 = vmax.f32 %v630, %v631
  %v656 = vmax.f32 %v632, %v633
  %v657 = vmax.f32 %v634, %v635
  %v658 = vmax.f32 %v636, %v637
  %v659 = vmax.f32 %v638, %v639
  %v660 = vmax.f32 %v640, %v641
  %v661 = vmax.f32 %v642, %v643
  %v662 = vmax.f32 %v644, %v645
  %v663 = vmax.f32 %v646, %v647
  %v664 = vld [vmem:[%s2] sm:$0x1]
  %v666 = vlaneseq
  %v667 = vshrl.u32 %v666, 7
  %v668 = vsub.s32 0, %v667
  %v669 = vrot.slane %v664, %v668
  %v671 = vadd.f32 %v648, %v669
  %v672 = vadd.f32 %v649, %v669
  %v673 = vadd.f32 %v650, %v669
  %v674 = vadd.f32 %v651, %v669
  %v675 = vadd.f32 %v652, %v669
  %v676 = vadd.f32 %v653, %v669
  %v677 = vadd.f32 %v654, %v669
  %v678 = vadd.f32 %v655, %v669
  %v679 = vadd.f32 %v656, %v669
  %v680 = vadd.f32 %v657, %v669
  %v681 = vadd.f32 %v658, %v669
  %v682 = vadd.f32 %v659, %v669
  %v683 = vadd.f32 %v660, %v669
  %v684 = vadd.f32 %v661, %v669
  %v685 = vadd.f32 %v662, %v669
  %v686 = vadd.f32 %v663, %v669
  %v687 = vmax.f32 %v671, 0.0
  %v688 = vmax.f32 %v672, 0.0
  %v689 = vmax.f32 %v673, 0.0
  %v690 = vmax.f32 %v674, 0.0
  %v691 = vmax.f32 %v675, 0.0
  %v692 = vmax.f32 %v676, 0.0
  %v693 = vmax.f32 %v677, 0.0
  %v694 = vmax.f32 %v678, 0.0
  %v695 = vmax.f32 %v679, 0.0
  %v696 = vmax.f32 %v680, 0.0
  %v697 = vmax.f32 %v681, 0.0
  %v698 = vmax.f32 %v682, 0.0
  %v699 = vmax.f32 %v683, 0.0
  %v700 = vmax.f32 %v684, 0.0
  %v701 = vmax.f32 %v685, 0.0
  %v702 = vmax.f32 %v686, 0.0
  %vm719 = vcmask 1041408
  %v720 = vrot.slane %v687, 6
  %v721 = vrot.slane %v688, 6
  %v722 = vsel %vm719, %v720, %v721
  %v723 = vrot.slane %v689, 6
  %v724 = vrot.slane %v690, 6
  %v725 = vsel %vm719, %v723, %v724
  %v726 = vrot.slane %v691, 6
  %v727 = vrot.slane %v692, 6
  %v728 = vsel %vm719, %v726, %v727
  %v729 = vrot.slane %v693, 6
  %v730 = vrot.slane %v694, 6
  %v731 = vsel %vm719, %v729, %v730
  %v732 = vrot.slane %v695, 6
  %v733 = vrot.slane %v696, 6
  %v734 = vsel %vm719, %v732, %v733
  %v735 = vrot.slane %v697, 6
  %v736 = vrot.slane %v698, 6
  %v737 = vsel %vm719, %v735, %v736
  %v738 = vrot.slane %v699, 6
  %v739 = vrot.slane %v700, 6
  %v740 = vsel %vm719, %v738, %v739
  %v741 = vrot.slane %v701, 6
  %v742 = vrot.slane %v702, 6
  %v743 = vsel %vm719, %v741, %v742
  %v744 = vrot.slane %v687, 1
  %v745 = vrot.slane %v689, 1
  %v746 = vrot.slane %v691, 1
  %v747 = vrot.slane %v693, 1
  %v748 = vrot.slane %v695, 1
  %v749 = vrot.slane %v697, 1
  %v750 = vrot.slane %v699, 1
  %v751 = vrot.slane %v701, 1
  %vm752 = vcmask 1040384
  %v753 = vrot.slane %v687, 7
  %v754 = vrot.slane %v688, 7
  %v755 = vsel %vm752, %v753, %v754
  %v756 = vrot.slane %v689, 7
  %v757 = vrot.slane %v690, 7
  %v758 = vsel %vm752, %v756, %v757
  %v759 = vrot.slane %v691, 7
  %v760 = vrot.slane %v692, 7
  %v761 = vsel %vm752, %v759, %v760
  %v762 = vrot.slane %v693, 7
  %v763 = vrot.slane %v694, 7
  %v764 = vsel %vm752, %v762, %v763
  %v765 = vrot.slane %v695, 7
  %v766 = vrot.slane %v696, 7
  %v767 = vsel %vm752, %v765, %v766
  %v768 = vrot.slane %v697, 7
  %v769 = vrot.slane %v698, 7
  %v770 = vsel %vm752, %v768, %v769
  %v771 = vrot.slane %v699, 7
  %v772 = vrot.slane %v700, 7
  %v773 = vsel %vm752, %v771, %v772
  %v774 = vrot.slane %v701, 7
  %v775 = vrot.slane %v702, 7
  %v776 = vsel %vm752, %v774, %v775
  %v777 = vrot.slane %v687, 2
  %v778 = vrot.slane %v689, 2
  %v779 = vrot.slane %v691, 2
  %v780 = vrot.slane %v693, 2
  %v781 = vrot.slane %v695, 2
  %v782 = vrot.slane %v697, 2
  %v783 = vrot.slane %v699, 2
  %v784 = vrot.slane %v701, 2
  %v785 = vrot.slane %v687, 3
  %v786 = vrot.slane %v689, 3
  %v787 = vrot.slane %v691, 3
  %v788 = vrot.slane %v693, 3
  %v789 = vrot.slane %v695, 3
  %v790 = vrot.slane %v697, 3
  %v791 = vrot.slane %v699, 3
  %v792 = vrot.slane %v701, 3
  %vm793 = vcmask 1046528
  %v794 = vrot.slane %v688, 1
  %v795 = vsel %vm793, %v744, %v794
  %v796 = vrot.slane %v690, 1
  %v797 = vsel %vm793, %v745, %v796
  %v798 = vrot.slane %v692, 1
  %v799 = vsel %vm793, %v746, %v798
  %v800 = vrot.slane %v694, 1
  %v801 = vsel %vm793, %v747, %v800
  %v802 = vrot.slane %v696, 1
  %v803 = vsel %vm793, %v748, %v802
  %v804 = vrot.slane %v698, 1
  %v805 = vsel %vm793, %v749, %v804
  %v806 = vrot.slane %v700, 1
  %v807 = vsel %vm793, %v750, %v806
  %v808 = vrot.slane %v702, 1
  %v809 = vsel %vm793, %v751, %v808
  %v810 = vrot.slane %v687, 4
  %v811 = vrot.slane %v689, 4
  %v812 = vrot.slane %v691, 4
  %v813 = vrot.slane %v693, 4
  %v814 = vrot.slane %v695, 4
  %v815 = vrot.slane %v697, 4
  %v816 = vrot.slane %v699, 4
  %v817 = vrot.slane %v701, 4
  %v818 = vrot.slane %v688, 2
  %v819 = vrot.slane %v690, 2
  %v820 = vrot.slane %v692, 2
  %v821 = vrot.slane %v694, 2
  %v822 = vrot.slane %v696, 2
  %v823 = vrot.slane %v698, 2
  %v824 = vrot.slane %v700, 2
  %v825 = vrot.slane %v702, 2
  %v826 = vrot.slane %v785, 6
  %v827 = vsel %vm719, %v826, %v826
  %v828 = vrot.slane %v795, 6
  %v829 = vrot.slane %v794, 6
  %v830 = vsel %vm719, %v828, %v829
  %v831 = vrot.slane %v810, 6
  %v832 = vsel %vm719, %v831, %v831
  %v833 = vrot.slane %v818, 6
  %v834 = vsel %vm719, %v833, %v833
  %v835 = vrot.slane %v786, 6
  %v836 = vsel %vm719, %v835, %v835
  %v837 = vrot.slane %v797, 6
  %v838 = vrot.slane %v796, 6
  %v839 = vsel %vm719, %v837, %v838
  %v840 = vrot.slane %v811, 6
  %v841 = vsel %vm719, %v840, %v840
  %v842 = vrot.slane %v819, 6
  %v843 = vsel %vm719, %v842, %v842
  %v844 = vrot.slane %v787, 6
  %v845 = vsel %vm719, %v844, %v844
  %v846 = vrot.slane %v799, 6
  %v847 = vrot.slane %v798, 6
  %v848 = vsel %vm719, %v846, %v847
  %v849 = vrot.slane %v812, 6
  %v850 = vsel %vm719, %v849, %v849
  %v851 = vrot.slane %v820, 6
  %v852 = vsel %vm719, %v851, %v851
  %v853 = vrot.slane %v788, 6
  %v854 = vsel %vm719, %v853, %v853
  %v855 = vrot.slane %v801, 6
  %v856 = vrot.slane %v800, 6
  %v857 = vsel %vm719, %v855, %v856
  %v858 = vrot.slane %v813, 6
  %v859 = vsel %vm719, %v858, %v858
  %v860 = vrot.slane %v821, 6
  %v861 = vsel %vm719, %v860, %v860
  %v862 = vrot.slane %v789, 6
  %v863 = vsel %vm719, %v862, %v862
  %v864 = vrot.slane %v803, 6
  %v865 = vrot.slane %v802, 6
  %v866 = vsel %vm719, %v864, %v865
  %v867 = vrot.slane %v814, 6
  %v868 = vsel %vm719, %v867, %v867
  %v869 = vrot.slane %v822, 6
  %v870 = vsel %vm719, %v869, %v869
  %v871 = vrot.slane %v790, 6
  %v872 = vsel %vm719, %v871, %v871
  %v873 = vrot.slane %v805, 6
  %v874 = vrot.slane %v804, 6
  %v875 = vsel %vm719, %v873, %v874
  %v876 = vrot.slane %v815, 6
  %v877 = vsel %vm719, %v876, %v876
  %v878 = vrot.slane %v823, 6
  %v879 = vsel %vm719, %v878, %v878
  %v880 = vrot.slane %v791, 6
  %v881 = vsel %vm719, %v880, %v880
  %v882 = vrot.slane %v807, 6
  %v883 = vrot.slane %v806, 6
  %v884 = vsel %vm719, %v882, %v883
  %v885 = vrot.slane %v816, 6
  %v886 = vsel %vm719, %v885, %v885
  %v887 = vrot.slane %v824, 6
  %v888 = vsel %vm719, %v887, %v887
  %v889 = vrot.slane %v792, 6
  %v890 = vsel %vm719, %v889, %v889
  %v891 = vrot.slane %v809, 6
  %v892 = vrot.slane %v808, 6
  %v893 = vsel %vm719, %v891, %v892
  %v894 = vrot.slane %v817, 6
  %v895 = vsel %vm719, %v894, %v894
  %v896 = vrot.slane %v825, 6
  %v897 = vsel %vm719, %v896, %v896
  %v898 = vcombine.low %v687, %v722
  %v899 = vcombine.low %v744, %v755
  %v900 = vcombine.low %v689, %v725
  %v901 = vcombine.low %v745, %v758
  %v902 = vcombine.low %v691, %v728
  %v903 = vcombine.low %v746, %v761
  %v904 = vcombine.low %v693, %v731
  %v905 = vcombine.low %v747, %v764
  %v906 = vcombine.low %v695, %v734
  %v907 = vcombine.low %v748, %v767
  %v908 = vcombine.low %v697, %v737
  %v909 = vcombine.low %v749, %v770
  %v910 = vcombine.low %v699, %v740
  %v911 = vcombine.low %v750, %v773
  %v912 = vcombine.low %v701, %v743
  %v913 = vcombine.low %v751, %v776
  %v914 = vcombine.low %v722, %v827
  %v915 = vcombine.low %v830, %v832
  %v916 = vcombine.low %v725, %v836
  %v917 = vcombine.low %v839, %v841
  %v918 = vcombine.low %v728, %v845
  %v919 = vcombine.low %v848, %v850
  %v920 = vcombine.low %v731, %v854
  %v921 = vcombine.low %v857, %v859
  %v922 = vcombine.low %v734, %v863
  %v923 = vcombine.low %v866, %v868
  %v924 = vcombine.low %v737, %v872
  %v925 = vcombine.low %v875, %v877
  %v926 = vcombine.low %v740, %v881
  %v927 = vcombine.low %v884, %v886
  %v928 = vcombine.low %v743, %v890
  %v929 = vcombine.low %v893, %v895
  %v930 = vcombine.low %v898, %v900
  %v931 = vcombine.high %v898, %v900
  %v932 = vcombine.low %v899, %v901
  %v933 = vcombine.high %v899, %v901
  %v934 = vcombine.low %v777, %v778
  %v935 = vcombine.low %v902, %v904
  %v936 = vcombine.high %v902, %v904
  %v937 = vcombine.low %v903, %v905
  %v938 = vcombine.high %v903, %v905
  %v939 = vcombine.low %v779, %v780
  %v940 = vcombine.low %v906, %v908
  %v941 = vcombine.high %v906, %v908
  %v942 = vcombine.low %v907, %v909
  %v943 = vcombine.high %v907, %v909
  %v944 = vcombine.low %v781, %v782
  %v945 = vcombine.low %v910, %v912
  %v946 = vcombine.high %v910, %v912
  %v947 = vcombine.low %v911, %v913
  %v948 = vcombine.high %v911, %v913
  %v949 = vcombine.low %v783, %v784
  %v950 = vcombine.low %v914, %v916
  %v951 = vcombine.high %v914, %v916
  %v952 = vcombine.low %v915, %v917
  %v953 = vcombine.high %v915, %v917
  %v954 = vcombine.low %v834, %v843
  %v955 = vcombine.low %v918, %v920
  %v956 = vcombine.high %v918, %v920
  %v957 = vcombine.low %v919, %v921
  %v958 = vcombine.high %v919, %v921
  %v959 = vcombine.low %v852, %v861
  %v960 = vcombine.low %v922, %v924
  %v961 = vcombine.high %v922, %v924
  %v962 = vcombine.low %v923, %v925
  %v963 = vcombine.high %v923, %v925
  %v964 = vcombine.low %v870, %v879
  %v965 = vcombine.low %v926, %v928
  %v966 = vcombine.high %v926, %v928
  %v967 = vcombine.low %v927, %v929
  %v968 = vcombine.high %v927, %v929
  %v969 = vcombine.low %v888, %v897
  %v1010 = vpack.c.bf16 %v935, %v930
  %v1011 = vpack.c.bf16 %v936, %v931
  %v1012 = vpack.c.bf16 %v937, %v932
  %v1013 = vpack.c.bf16 %v938, %v933
  %v1014 = vpack.c.bf16 %v939, %v934
  %v1015 = vpack.c.bf16 %v945, %v940
  %v1016 = vpack.c.bf16 %v946, %v941
  %v1017 = vpack.c.bf16 %v947, %v942
  %v1018 = vpack.c.bf16 %v948, %v943
  %v1019 = vpack.c.bf16 %v949, %v944
  %v1020 = vpack.c.bf16 %v955, %v950
  %v1021 = vpack.c.bf16 %v956, %v951
  %v1022 = vpack.c.bf16 %v957, %v952
  %v1023 = vpack.c.bf16 %v958, %v953
  %v1024 = vpack.c.bf16 %v959, %v954
  %v1025 = vpack.c.bf16 %v965, %v960
  %v1026 = vpack.c.bf16 %v966, %v961
  %v1027 = vpack.c.bf16 %v967, %v962
  %v1028 = vpack.c.bf16 %v968, %v963
  %v1029 = vpack.c.bf16 %v969, %v964
  %v1030 = vld [vmem:[%s3] sm:$0xff]
  %v1031 = vld [vmem:[%s3 + $0x8] sm:$0xff]
  %v1032 = vld [vmem:[%s3 + $0x10] sm:$0xff]
  %v1033 = vld [vmem:[%s3 + $0x18] sm:$0xff]
  %v1034 = vld [vmem:[%s3 + $0x20] sm:$0xff]
  %v1035 = vld [vmem:[%s3 + $0x28] sm:$0xff]
  %v1036 = vld [vmem:[%s3 + $0x30] sm:$0xff]
  %v1037 = vld [vmem:[%s3 + $0x38] sm:$0xff]
  %v1038 = vld [vmem:[%s3 + $0x40] sm:$0xff]
  %v1039 = vld [vmem:[%s3 + $0x48] sm:$0xff]
  %v1040 = vld [vmem:[%s3 + $0x50] sm:$0xff]
  %v1041 = vld [vmem:[%s3 + $0x58] sm:$0xff]
  %v1042 = vld [vmem:[%s3 + $0x60] sm:$0xff]
  %v1043 = vld [vmem:[%s3 + $0x68] sm:$0xff]
  %v1044 = vld [vmem:[%s3 + $0x70] sm:$0xff]
  %v1045 = vld [vmem:[%s3 + $0x78] sm:$0xff]
  %v1046 = vld [vmem:[%s3 + $0x80] sm:$0xff]
  %v1047 = vld [vmem:[%s3 + $0x88] sm:$0xff]
  %v1048 = vld [vmem:[%s3 + $0x90] sm:$0xff]
  %v1049 = vld [vmem:[%s3 + $0x98] sm:$0xff]
  %v1050 = vld [vmem:[%s3 + $0xa0] sm:$0xff]
  %v1051 = vld [vmem:[%s3 + $0xa8] sm:$0xff]
  %v1052 = vld [vmem:[%s3 + $0xb0] sm:$0xff]
  %v1053 = vld [vmem:[%s3 + $0xb8] sm:$0xff]
  %v1054 = vld [vmem:[%s3 + $0xc0] sm:$0xff]
  %v1055 = vld [vmem:[%s3 + $0xc8] sm:$0xff]
  %v1056 = vld [vmem:[%s3 + $0xd0] sm:$0xff]
  %v1057 = vld [vmem:[%s3 + $0xd8] sm:$0xff]
  %v1058 = vld [vmem:[%s3 + $0xe0] sm:$0xff]
  %v1059 = vld [vmem:[%s3 + $0xe8] sm:$0xff]
  %v1060 = vld [vmem:[%s3 + $0xf0] sm:$0xff]
  %v1061 = vld [vmem:[%s3 + $0xf8] sm:$0xff]
  %v1062 = vld [vmem:[%s3 + $0x100] sm:$0xff]
  %v1063 = vld [vmem:[%s3 + $0x108] sm:$0xff]
  %v1064 = vld [vmem:[%s3 + $0x110] sm:$0xff]
  %v1065 = vld [vmem:[%s3 + $0x118] sm:$0xff]
  %v1066 = vld [vmem:[%s3 + $0x120] sm:$0xff]
  %v1067 = vld [vmem:[%s3 + $0x128] sm:$0xff]
  %v1068 = vld [vmem:[%s3 + $0x130] sm:$0xff]
  %v1069 = vld [vmem:[%s3 + $0x138] sm:$0xff]
  %v1070 = vld [vmem:[%s3 + $0x140] sm:$0xff]
  %v1071 = vld [vmem:[%s3 + $0x148] sm:$0xff]
  %v1072 = vld [vmem:[%s3 + $0x150] sm:$0xff]
  %v1073 = vld [vmem:[%s3 + $0x158] sm:$0xff]
  %v1074 = vld [vmem:[%s3 + $0x160] sm:$0xff]
  %v1075 = vld [vmem:[%s3 + $0x168] sm:$0xff]
  %v1076 = vld [vmem:[%s3 + $0x170] sm:$0xff]
  %v1077 = vld [vmem:[%s3 + $0x178] sm:$0xff]
  %v1078 = vld [vmem:[%s3 + $0x180] sm:$0xff]
  %v1079 = vld [vmem:[%s3 + $0x188] sm:$0xff]
  %v1080 = vld [vmem:[%s3 + $0x190] sm:$0xff]
  %v1081 = vld [vmem:[%s3 + $0x198] sm:$0xff]
  %v1082 = vld [vmem:[%s3 + $0x1a0] sm:$0xff]
  %v1083 = vld [vmem:[%s3 + $0x1a8] sm:$0xff]
  %v1084 = vld [vmem:[%s3 + $0x1b0] sm:$0xff]
  %v1085 = vld [vmem:[%s3 + $0x1b8] sm:$0xff]
  %v1086 = vld [vmem:[%s3 + $0x1c0] sm:$0xff]
  %v1087 = vld [vmem:[%s3 + $0x1c8] sm:$0xff]
  %v1088 = vld [vmem:[%s3 + $0x1d0] sm:$0xff]
  %v1089 = vld [vmem:[%s3 + $0x1d8] sm:$0xff]
  %v1090 = vld [vmem:[%s3 + $0x1e0] sm:$0xff]
  %v1091 = vld [vmem:[%s3 + $0x1e8] sm:$0xff]
  %v1092 = vld [vmem:[%s3 + $0x1f0] sm:$0xff]
  %v1093 = vld [vmem:[%s3 + $0x1f8] sm:$0xff]
  %v1094 = vld [vmem:[%s3 + $0x200] sm:$0xff]
  %v1095 = vld [vmem:[%s3 + $0x208] sm:$0xff]
  %v1096 = vld [vmem:[%s3 + $0x210] sm:$0xff]
  %v1097 = vld [vmem:[%s3 + $0x218] sm:$0xff]
  %v1098 = vld [vmem:[%s3 + $0x220] sm:$0xff]
  %v1099 = vld [vmem:[%s3 + $0x228] sm:$0xff]
  %v1100 = vld [vmem:[%s3 + $0x230] sm:$0xff]
  %v1101 = vld [vmem:[%s3 + $0x238] sm:$0xff]
  %v1102 = vld [vmem:[%s3 + $0x240] sm:$0xff]
  %v1103 = vld [vmem:[%s3 + $0x248] sm:$0xff]
  %v1104 = vld [vmem:[%s3 + $0x250] sm:$0xff]
  %v1105 = vld [vmem:[%s3 + $0x258] sm:$0xff]
  %v1106 = vld [vmem:[%s3 + $0x260] sm:$0xff]
  %v1107 = vld [vmem:[%s3 + $0x268] sm:$0xff]
  %v1108 = vld [vmem:[%s3 + $0x270] sm:$0xff]
  %v1109 = vld [vmem:[%s3 + $0x278] sm:$0xff]
  %v1190 = vunpack.c.l.b16 %v1030
  %v1191 = vunpack.c.h.b16 %v1030
  %v1192 = vunpack.c.l.b16 %v1031
  %v1193 = vunpack.c.h.b16 %v1031
  %v1194 = vunpack.c.l.b16 %v1032
  %v1195 = vunpack.c.h.b16 %v1032
  %v1196 = vunpack.c.l.b16 %v1033
  %v1197 = vunpack.c.h.b16 %v1033
  %v1198 = vunpack.c.l.b16 %v1034
  %v1199 = vunpack.c.h.b16 %v1034
  %v1200 = vunpack.c.l.b16 %v1035
  %v1201 = vunpack.c.h.b16 %v1035
  %v1202 = vunpack.c.l.b16 %v1036
  %v1203 = vunpack.c.h.b16 %v1036
  %v1204 = vunpack.c.l.b16 %v1037
  %v1205 = vunpack.c.h.b16 %v1037
  %v1206 = vunpack.c.l.b16 %v1038
  %v1207 = vunpack.c.h.b16 %v1038
  %v1208 = vunpack.c.l.b16 %v1039
  %v1209 = vunpack.c.h.b16 %v1039
  %v1210 = vunpack.c.l.b16 %v1040
  %v1211 = vunpack.c.h.b16 %v1040
  %v1212 = vunpack.c.l.b16 %v1041
  %v1213 = vunpack.c.h.b16 %v1041
  %v1214 = vunpack.c.l.b16 %v1042
  %v1215 = vunpack.c.h.b16 %v1042
  %v1216 = vunpack.c.l.b16 %v1043
  %v1217 = vunpack.c.h.b16 %v1043
  %v1218 = vunpack.c.l.b16 %v1044
  %v1219 = vunpack.c.h.b16 %v1044
  %v1220 = vunpack.c.l.b16 %v1045
  %v1221 = vunpack.c.h.b16 %v1045
  %v1222 = vunpack.c.l.b16 %v1046
  %v1223 = vunpack.c.h.b16 %v1046
  %v1224 = vunpack.c.l.b16 %v1047
  %v1225 = vunpack.c.h.b16 %v1047
  %v1226 = vunpack.c.l.b16 %v1048
  %v1227 = vunpack.c.h.b16 %v1048
  %v1228 = vunpack.c.l.b16 %v1049
  %v1229 = vunpack.c.h.b16 %v1049
  %v1230 = vunpack.c.l.b16 %v1050
  %v1231 = vunpack.c.h.b16 %v1050
  %v1232 = vunpack.c.l.b16 %v1051
  %v1233 = vunpack.c.h.b16 %v1051
  %v1234 = vunpack.c.l.b16 %v1052
  %v1235 = vunpack.c.h.b16 %v1052
  %v1236 = vunpack.c.l.b16 %v1053
  %v1237 = vunpack.c.h.b16 %v1053
  %v1238 = vunpack.c.l.b16 %v1054
  %v1239 = vunpack.c.h.b16 %v1054
  %v1240 = vunpack.c.l.b16 %v1055
  %v1241 = vunpack.c.h.b16 %v1055
  %v1242 = vunpack.c.l.b16 %v1056
  %v1243 = vunpack.c.h.b16 %v1056
  %v1244 = vunpack.c.l.b16 %v1057
  %v1245 = vunpack.c.h.b16 %v1057
  %v1246 = vunpack.c.l.b16 %v1058
  %v1247 = vunpack.c.h.b16 %v1058
  %v1248 = vunpack.c.l.b16 %v1059
  %v1249 = vunpack.c.h.b16 %v1059
  %v1250 = vunpack.c.l.b16 %v1060
  %v1251 = vunpack.c.h.b16 %v1060
  %v1252 = vunpack.c.l.b16 %v1061
  %v1253 = vunpack.c.h.b16 %v1061
  %v1254 = vunpack.c.l.b16 %v1062
  %v1255 = vunpack.c.h.b16 %v1062
  %v1256 = vunpack.c.l.b16 %v1063
  %v1257 = vunpack.c.h.b16 %v1063
  %v1258 = vunpack.c.l.b16 %v1064
  %v1259 = vunpack.c.h.b16 %v1064
  %v1260 = vunpack.c.l.b16 %v1065
  %v1261 = vunpack.c.h.b16 %v1065
  %v1262 = vunpack.c.l.b16 %v1066
  %v1263 = vunpack.c.h.b16 %v1066
  %v1264 = vunpack.c.l.b16 %v1067
  %v1265 = vunpack.c.h.b16 %v1067
  %v1266 = vunpack.c.l.b16 %v1068
  %v1267 = vunpack.c.h.b16 %v1068
  %v1268 = vunpack.c.l.b16 %v1069
  %v1269 = vunpack.c.h.b16 %v1069
  %v1270 = vunpack.c.l.b16 %v1070
  %v1271 = vunpack.c.h.b16 %v1070
  %v1272 = vunpack.c.l.b16 %v1071
  %v1273 = vunpack.c.h.b16 %v1071
  %v1274 = vunpack.c.l.b16 %v1072
  %v1275 = vunpack.c.h.b16 %v1072
  %v1276 = vunpack.c.l.b16 %v1073
  %v1277 = vunpack.c.h.b16 %v1073
  %v1278 = vunpack.c.l.b16 %v1074
  %v1279 = vunpack.c.h.b16 %v1074
  %v1280 = vunpack.c.l.b16 %v1075
  %v1281 = vunpack.c.h.b16 %v1075
  %v1282 = vunpack.c.l.b16 %v1076
  %v1283 = vunpack.c.h.b16 %v1076
  %v1284 = vunpack.c.l.b16 %v1077
  %v1285 = vunpack.c.h.b16 %v1077
  %v1286 = vunpack.c.l.b16 %v1078
  %v1287 = vunpack.c.h.b16 %v1078
  %v1288 = vunpack.c.l.b16 %v1079
  %v1289 = vunpack.c.h.b16 %v1079
  %v1290 = vunpack.c.l.b16 %v1080
  %v1291 = vunpack.c.h.b16 %v1080
  %v1292 = vunpack.c.l.b16 %v1081
  %v1293 = vunpack.c.h.b16 %v1081
  %v1294 = vunpack.c.l.b16 %v1082
  %v1295 = vunpack.c.h.b16 %v1082
  %v1296 = vunpack.c.l.b16 %v1083
  %v1297 = vunpack.c.h.b16 %v1083
  %v1298 = vunpack.c.l.b16 %v1084
  %v1299 = vunpack.c.h.b16 %v1084
  %v1300 = vunpack.c.l.b16 %v1085
  %v1301 = vunpack.c.h.b16 %v1085
  %v1302 = vunpack.c.l.b16 %v1086
  %v1303 = vunpack.c.h.b16 %v1086
  %v1304 = vunpack.c.l.b16 %v1087
  %v1305 = vunpack.c.h.b16 %v1087
  %v1306 = vunpack.c.l.b16 %v1088
  %v1307 = vunpack.c.h.b16 %v1088
  %v1308 = vunpack.c.l.b16 %v1089
  %v1309 = vunpack.c.h.b16 %v1089
  %v1310 = vunpack.c.l.b16 %v1090
  %v1311 = vunpack.c.h.b16 %v1090
  %v1312 = vunpack.c.l.b16 %v1091
  %v1313 = vunpack.c.h.b16 %v1091
  %v1314 = vunpack.c.l.b16 %v1092
  %v1315 = vunpack.c.h.b16 %v1092
  %v1316 = vunpack.c.l.b16 %v1093
  %v1317 = vunpack.c.h.b16 %v1093
  %v1318 = vunpack.c.l.b16 %v1094
  %v1319 = vunpack.c.h.b16 %v1094
  %v1320 = vunpack.c.l.b16 %v1095
  %v1321 = vunpack.c.h.b16 %v1095
  %v1322 = vunpack.c.l.b16 %v1096
  %v1323 = vunpack.c.h.b16 %v1096
  %v1324 = vunpack.c.l.b16 %v1097
  %v1325 = vunpack.c.h.b16 %v1097
  %v1326 = vunpack.c.l.b16 %v1098
  %v1327 = vunpack.c.h.b16 %v1098
  %v1328 = vunpack.c.l.b16 %v1099
  %v1329 = vunpack.c.h.b16 %v1099
  %v1330 = vunpack.c.l.b16 %v1100
  %v1331 = vunpack.c.h.b16 %v1100
  %v1332 = vunpack.c.l.b16 %v1101
  %v1333 = vunpack.c.h.b16 %v1101
  %v1334 = vunpack.c.l.b16 %v1102
  %v1335 = vunpack.c.h.b16 %v1102
  %v1336 = vunpack.c.l.b16 %v1103
  %v1337 = vunpack.c.h.b16 %v1103
  %v1338 = vunpack.c.l.b16 %v1104
  %v1339 = vunpack.c.h.b16 %v1104
  %v1340 = vunpack.c.l.b16 %v1105
  %v1341 = vunpack.c.h.b16 %v1105
  %v1342 = vunpack.c.l.b16 %v1106
  %v1343 = vunpack.c.h.b16 %v1106
  %v1344 = vunpack.c.l.b16 %v1107
  %v1345 = vunpack.c.h.b16 %v1107
  %v1346 = vunpack.c.l.b16 %v1108
  %v1347 = vunpack.c.h.b16 %v1108
  %v1348 = vunpack.c.l.b16 %v1109
  %v1349 = vunpack.c.h.b16 %v1109
  %v1350 = vpack.c.b16 %v1192, %v1190
  %v1351 = vpack.c.b16 %v1193, %v1191
  %v1352 = vpack.c.b16 %v1196, %v1194
  %v1353 = vpack.c.b16 %v1197, %v1195
  %v1354 = vpack.c.b16 %v1200, %v1198
  %v1355 = vpack.c.b16 %v1201, %v1199
  %v1356 = vpack.c.b16 %v1204, %v1202
  %v1357 = vpack.c.b16 %v1205, %v1203
  %v1358 = vpack.c.b16 %v1208, %v1206
  %v1359 = vpack.c.b16 %v1209, %v1207
  %v1360 = vpack.c.b16 %v1212, %v1210
  %v1361 = vpack.c.b16 %v1213, %v1211
  %v1362 = vpack.c.b16 %v1216, %v1214
  %v1363 = vpack.c.b16 %v1217, %v1215
  %v1364 = vpack.c.b16 %v1220, %v1218
  %v1365 = vpack.c.b16 %v1221, %v1219
  %v1366 = vpack.c.b16 %v1224, %v1222
  %v1367 = vpack.c.b16 %v1225, %v1223
  %v1368 = vpack.c.b16 %v1228, %v1226
  %v1369 = vpack.c.b16 %v1229, %v1227
  %v1370 = vpack.c.b16 %v1232, %v1230
  %v1371 = vpack.c.b16 %v1233, %v1231
  %v1372 = vpack.c.b16 %v1236, %v1234
  %v1373 = vpack.c.b16 %v1237, %v1235
  %v1374 = vpack.c.b16 %v1240, %v1238
  %v1375 = vpack.c.b16 %v1241, %v1239
  %v1376 = vpack.c.b16 %v1244, %v1242
  %v1377 = vpack.c.b16 %v1245, %v1243
  %v1378 = vpack.c.b16 %v1248, %v1246
  %v1379 = vpack.c.b16 %v1249, %v1247
  %v1380 = vpack.c.b16 %v1252, %v1250
  %v1381 = vpack.c.b16 %v1253, %v1251
  %v1382 = vpack.c.b16 %v1256, %v1254
  %v1383 = vpack.c.b16 %v1257, %v1255
  %v1384 = vpack.c.b16 %v1260, %v1258
  %v1385 = vpack.c.b16 %v1261, %v1259
  %v1386 = vpack.c.b16 %v1264, %v1262
  %v1387 = vpack.c.b16 %v1265, %v1263
  %v1388 = vpack.c.b16 %v1268, %v1266
  %v1389 = vpack.c.b16 %v1269, %v1267
  %v1390 = vpack.c.b16 %v1272, %v1270
  %v1391 = vpack.c.b16 %v1273, %v1271
  %v1392 = vpack.c.b16 %v1276, %v1274
  %v1393 = vpack.c.b16 %v1277, %v1275
  %v1394 = vpack.c.b16 %v1280, %v1278
  %v1395 = vpack.c.b16 %v1281, %v1279
  %v1396 = vpack.c.b16 %v1284, %v1282
  %v1397 = vpack.c.b16 %v1285, %v1283
  %v1398 = vpack.c.b16 %v1288, %v1286
  %v1399 = vpack.c.b16 %v1289, %v1287
  %v1400 = vpack.c.b16 %v1292, %v1290
  %v1401 = vpack.c.b16 %v1293, %v1291
  %v1402 = vpack.c.b16 %v1296, %v1294
  %v1403 = vpack.c.b16 %v1297, %v1295
  %v1404 = vpack.c.b16 %v1300, %v1298
  %v1405 = vpack.c.b16 %v1301, %v1299
  %v1406 = vpack.c.b16 %v1304, %v1302
  %v1407 = vpack.c.b16 %v1305, %v1303
  %v1408 = vpack.c.b16 %v1308, %v1306
  %v1409 = vpack.c.b16 %v1309, %v1307
  %v1410 = vpack.c.b16 %v1312, %v1310
  %v1411 = vpack.c.b16 %v1313, %v1311
  %v1412 = vpack.c.b16 %v1316, %v1314
  %v1413 = vpack.c.b16 %v1317, %v1315
  %v1414 = vpack.c.b16 %v1320, %v1318
  %v1415 = vpack.c.b16 %v1321, %v1319
  %v1416 = vpack.c.b16 %v1324, %v1322
  %v1417 = vpack.c.b16 %v1325, %v1323
  %v1418 = vpack.c.b16 %v1328, %v1326
  %v1419 = vpack.c.b16 %v1329, %v1327
  %v1420 = vpack.c.b16 %v1332, %v1330
  %v1421 = vpack.c.b16 %v1333, %v1331
  %v1422 = vpack.c.b16 %v1336, %v1334
  %v1423 = vpack.c.b16 %v1337, %v1335
  %v1424 = vpack.c.b16 %v1340, %v1338
  %v1425 = vpack.c.b16 %v1341, %v1339
  %v1426 = vpack.c.b16 %v1344, %v1342
  %v1427 = vpack.c.b16 %v1345, %v1343
  %v1428 = vpack.c.b16 %v1348, %v1346
  %v1429 = vpack.c.b16 %v1349, %v1347
  %1510 = vmatprep.subr.bf16.mxu0 %v1351
  %1511 = vmatpush1.bf16.msra.mxu0 %v1350
  %1512 = vmatprep.subr.bf16.mxu0 %v1353
  %1513 = vmatpush1.bf16.msra.mxu0 %v1352
  %1514 = vmatprep.subr.bf16.mxu0 %v1355
  %1515 = vmatpush1.bf16.msra.mxu0 %v1354
  %1516 = vmatprep.subr.bf16.mxu0 %v1357
  %1517 = vmatpush1.bf16.msra.mxu0 %v1356
  %1518 = vmatprep.subr.bf16.mxu0 %v1359
  %1519 = vmatpush1.bf16.msra.mxu0 %v1358
  %1520 = vmatprep.subr.bf16.mxu0 %v1361
  %1521 = vmatpush1.bf16.msra.mxu0 %v1360
  %1522 = vmatprep.subr.bf16.mxu0 %v1363
  %1523 = vmatpush1.bf16.msra.mxu0 %v1362
  %1524 = vmatprep.subr.bf16.mxu0 %v1365
  %1525 = vmatpush1.bf16.msra.mxu0 %v1364
  %1526 = vmatprep.subr.bf16.mxu0 %v1367
  %1527 = vmatpush1.bf16.msra.mxu0 %v1366
  %1528 = vmatprep.subr.bf16.mxu0 %v1369
  %1529 = vmatpush1.bf16.msra.mxu0 %v1368
  %1530 = vmatprep.subr.bf16.mxu0 %v1371
  %1531 = vmatpush1.bf16.msra.mxu0 %v1370
  %1532 = vmatprep.subr.bf16.mxu0 %v1373
  %1533 = vmatpush1.bf16.msra.mxu0 %v1372
  %1534 = vmatprep.subr.bf16.mxu0 %v1375
  %1535 = vmatpush1.bf16.msra.mxu0 %v1374
  %1536 = vmatprep.subr.bf16.mxu0 %v1377
  %1537 = vmatpush1.bf16.msra.mxu0 %v1376
  %1538 = vmatprep.subr.bf16.mxu0 %v1379
  %1539 = vmatpush1.bf16.msra.mxu0 %v1378
  %1540 = vmatprep.subr.bf16.mxu0 %v1381
  %1541 = vmatpush1.bf16.msra.mxu0 %v1380
  %1542 = vmatprep.mubr.bf16.mxu0 %v1011
  %1543 = vmatmul.mubr.bf16.gmra.mrb[0].mxu0 %v1010
  %v1544 = vpop.f32.mrb[0].mxu0
  %v1545 = vadd.f32 0.0, %v1544
  %v1546 = vpop.f32.mrb[0].mxu0
  %v1547 = vadd.f32 0.0, %v1546
  %v1548 = vpop.f32.mrb[0].mxu0
  %v1549 = vadd.f32 0.0, %v1548
  %v1550 = vpop.f32.mrb[0].mxu0
  %v1551 = vadd.f32 0.0, %v1550
  %1552 = vmatprep.mubr.bf16.mxu0 %v1016
  %1553 = vmatmul.mubr.bf16.gmra.mrb[0].mxu0 %v1015
  %v1554 = vpop.f32.mrb[0].mxu0
  %v1555 = vadd.f32 0.0, %v1554
  %v1556 = vpop.f32.mrb[0].mxu0
  %v1557 = vadd.f32 0.0, %v1556
  %v1558 = vpop.f32.mrb[0].mxu0
  %v1559 = vadd.f32 0.0, %v1558
  %v1560 = vpop.f32.mrb[0].mxu0
  %v1561 = vadd.f32 0.0, %v1560
  %1562 = vmatprep.mubr.bf16.mxu0 %v1021
  %1563 = vmatmul.mubr.bf16.gmra.mrb[0].mxu0 %v1020
  %v1564 = vpop.f32.mrb[0].mxu0
  %v1565 = vadd.f32 0.0, %v1564
  %v1566 = vpop.f32.mrb[0].mxu0
  %v1567 = vadd.f32 0.0, %v1566
  %v1568 = vpop.f32.mrb[0].mxu0
  %v1569 = vadd.f32 0.0, %v1568
  %v1570 = vpop.f32.mrb[0].mxu0
  %v1571 = vadd.f32 0.0, %v1570
  %1572 = vmatprep.mubr.bf16.mxu0 %v1026
  %1573 = vmatmul.mubr.bf16.gmra.mrb[0].mxu0 %v1025
  %v1574 = vpop.f32.mrb[0].mxu0
  %v1575 = vadd.f32 0.0, %v1574
  %v1576 = vpop.f32.mrb[0].mxu0
  %v1577 = vadd.f32 0.0, %v1576
  %v1578 = vpop.f32.mrb[0].mxu0
  %v1579 = vadd.f32 0.0, %v1578
  %v1580 = vpop.f32.mrb[0].mxu0
  %v1581 = vadd.f32 0.0, %v1580
  %1582 = vdwg.mxu0
  %1583 = vmatprep.subr.bf16.mxu0 %v1383
  %1584 = vmatpush1.bf16.msra.mxu0 %v1382
  %1585 = vmatprep.subr.bf16.mxu0 %v1385
  %1586 = vmatpush1.bf16.msra.mxu0 %v1384
  %1587 = vmatprep.subr.bf16.mxu0 %v1387
  %1588 = vmatpush1.bf16.msra.mxu0 %v1386
  %1589 = vmatprep.subr.bf16.mxu0 %v1389
  %1590 = vmatpush1.bf16.msra.mxu0 %v1388
  %1591 = vmatprep.subr.bf16.mxu0 %v1391
  %1592 = vmatpush1.bf16.msra.mxu0 %v1390
  %1593 = vmatprep.subr.bf16.mxu0 %v1393
  %1594 = vmatpush1.bf16.msra.mxu0 %v1392
  %1595 = vmatprep.subr.bf16.mxu0 %v1395
  %1596 = vmatpush1.bf16.msra.mxu0 %v1394
  %1597 = vmatprep.subr.bf16.mxu0 %v1397
  %1598 = vmatpush1.bf16.msra.mxu0 %v1396
  %1599 = vmatprep.subr.bf16.mxu0 %v1399
  %1600 = vmatpush1.bf16.msra.mxu0 %v1398
  %1601 = vmatprep.subr.bf16.mxu0 %v1401
  %1602 = vmatpush1.bf16.msra.mxu0 %v1400
  %1603 = vmatprep.subr.bf16.mxu0 %v1403
  %1604 = vmatpush1.bf16.msra.mxu0 %v1402
  %1605 = vmatprep.subr.bf16.mxu0 %v1405
  %1606 = vmatpush1.bf16.msra.mxu0 %v1404
  %1607 = vmatprep.subr.bf16.mxu0 %v1407
  %1608 = vmatpush1.bf16.msra.mxu0 %v1406
  %1609 = vmatprep.subr.bf16.mxu0 %v1409
  %1610 = vmatpush1.bf16.msra.mxu0 %v1408
  %1611 = vmatprep.subr.bf16.mxu0 %v1411
  %1612 = vmatpush1.bf16.msra.mxu0 %v1410
  %1613 = vmatprep.subr.bf16.mxu0 %v1413
  %1614 = vmatpush1.bf16.msra.mxu0 %v1412
  %1615 = vmatprep.mubr.bf16.mxu0 %v1013
  %1616 = vmatmul.mubr.bf16.gmra.mrb[0].mxu0 %v1012
  %v1617 = vpop.f32.mrb[0].mxu0
  %v1618 = vadd.f32 %v1545, %v1617
  %v1619 = vpop.f32.mrb[0].mxu0
  %v1620 = vadd.f32 %v1547, %v1619
  %v1621 = vpop.f32.mrb[0].mxu0
  %v1622 = vadd.f32 %v1549, %v1621
  %v1623 = vpop.f32.mrb[0].mxu0
  %v1624 = vadd.f32 %v1551, %v1623
  %1625 = vmatprep.mubr.bf16.mxu0 %v1018
  %1626 = vmatmul.mubr.bf16.gmra.mrb[0].mxu0 %v1017
  %v1627 = vpop.f32.mrb[0].mxu0
  %v1628 = vadd.f32 %v1555, %v1627
  %v1629 = vpop.f32.mrb[0].mxu0
  %v1630 = vadd.f32 %v1557, %v1629
  %v1631 = vpop.f32.mrb[0].mxu0
  %v1632 = vadd.f32 %v1559, %v1631
  %v1633 = vpop.f32.mrb[0].mxu0
  %v1634 = vadd.f32 %v1561, %v1633
  %1635 = vmatprep.mubr.bf16.mxu0 %v1023
  %1636 = vmatmul.mubr.bf16.gmra.mrb[0].mxu0 %v1022
  %v1637 = vpop.f32.mrb[0].mxu0
  %v1638 = vadd.f32 %v1565, %v1637
  %v1639 = vpop.f32.mrb[0].mxu0
  %v1640 = vadd.f32 %v1567, %v1639
  %v1641 = vpop.f32.mrb[0].mxu0
  %v1642 = vadd.f32 %v1569, %v1641
  %v1643 = vpop.f32.mrb[0].mxu0
  %v1644 = vadd.f32 %v1571, %v1643
  %1645 = vmatprep.mubr.bf16.mxu0 %v1028
  %1646 = vmatmul.mubr.bf16.gmra.mrb[0].mxu0 %v1027
  %v1647 = vpop.f32.mrb[0].mxu0
  %v1648 = vadd.f32 %v1575, %v1647
  %v1649 = vpop.f32.mrb[0].mxu0
  %v1650 = vadd.f32 %v1577, %v1649
  %v1651 = vpop.f32.mrb[0].mxu0
  %v1652 = vadd.f32 %v1579, %v1651
  %v1653 = vpop.f32.mrb[0].mxu0
  %v1654 = vadd.f32 %v1581, %v1653
  %1655 = vdwg.mxu0
  %1656 = vmatprep.subr.bf16.mxu0 %v1415
  %1657 = vmatpush1.bf16.msra.mxu0 %v1414
  %1658 = vmatprep.subr.bf16.mxu0 %v1417
  %1659 = vmatpush1.bf16.msra.mxu0 %v1416
  %1660 = vmatprep.subr.bf16.mxu0 %v1419
  %1661 = vmatpush1.bf16.msra.mxu0 %v1418
  %1662 = vmatprep.subr.bf16.mxu0 %v1421
  %1663 = vmatpush1.bf16.msra.mxu0 %v1420
  %1664 = vmatprep.subr.bf16.mxu0 %v1423
  %1665 = vmatpush1.bf16.msra.mxu0 %v1422
  %1666 = vmatprep.subr.bf16.mxu0 %v1425
  %1667 = vmatpush1.bf16.msra.mxu0 %v1424
  %1668 = vmatprep.subr.bf16.mxu0 %v1427
  %1669 = vmatpush1.bf16.msra.mxu0 %v1426
  %1670 = vmatprep.subr.bf16.mxu0 %v1429
  %1671 = vmatpush1.bf16.msra.mxu0 %v1428
  %1672 = vmatprep.subr.bf16.mxu0 0
  %1673 = vmatpush1.bf16.msra.mxu0 0
  %1674 = vmatprep.subr.bf16.mxu0 0
  %1675 = vmatpush1.bf16.msra.mxu0 0
  %1676 = vmatprep.subr.bf16.mxu0 0
  %1677 = vmatpush1.bf16.msra.mxu0 0
  %1678 = vmatprep.subr.bf16.mxu0 0
  %1679 = vmatpush1.bf16.msra.mxu0 0
  %1680 = vmatprep.subr.bf16.mxu0 0
  %1681 = vmatpush1.bf16.msra.mxu0 0
  %1682 = vmatprep.subr.bf16.mxu0 0
  %1683 = vmatpush1.bf16.msra.mxu0 0
  %1684 = vmatprep.subr.bf16.mxu0 0
  %1685 = vmatpush1.bf16.msra.mxu0 0
  %1686 = vmatprep.subr.bf16.mxu0 0
  %1687 = vmatpush1.bf16.msra.mxu0 0
  %1688 = vmatprep.mubr.bf16.mxu0 0
  %1689 = vmatmul.mubr.bf16.gmra.mrb[0].mxu0 %v1014
  %v1690 = vpop.f32.mrb[0].mxu0
  %v1691 = vadd.f32 %v1618, %v1690
  %v1692 = vpop.f32.mrb[0].mxu0
  %v1693 = vadd.f32 %v1620, %v1692
  %v1694 = vpop.f32.mrb[0].mxu0
  %v1695 = vadd.f32 %v1622, %v1694
  %v1696 = vpop.f32.mrb[0].mxu0
  %v1697 = vadd.f32 %v1624, %v1696
  %1698 = vmatprep.mubr.bf16.mxu0 0
  %1699 = vmatmul.mubr.bf16.gmra.mrb[0].mxu0 %v1019
  %v1700 = vpop.f32.mrb[0].mxu0
  %v1701 = vadd.f32 %v1628, %v1700
  %v1702 = vpop.f32.mrb[0].mxu0
  %v1703 = vadd.f32 %v1630, %v1702
  %v1704 = vpop.f32.mrb[0].mxu0
  %v1705 = vadd.f32 %v1632, %v1704
  %v1706 = vpop.f32.mrb[0].mxu0
  %v1707 = vadd.f32 %v1634, %v1706
  %1708 = vmatprep.mubr.bf16.mxu0 0
  %1709 = vmatmul.mubr.bf16.gmra.mrb[0].mxu0 %v1024
  %v1710 = vpop.f32.mrb[0].mxu0
  %v1711 = vadd.f32 %v1638, %v1710
  %v1712 = vpop.f32.mrb[0].mxu0
  %v1713 = vadd.f32 %v1640, %v1712
  %v1714 = vpop.f32.mrb[0].mxu0
  %v1715 = vadd.f32 %v1642, %v1714
  %v1716 = vpop.f32.mrb[0].mxu0
  %v1717 = vadd.f32 %v1644, %v1716
  %1718 = vmatprep.mubr.bf16.mxu0 0
  %1719 = vmatmul.mubr.bf16.gmra.mrb[0].mxu0 %v1029
  %v1720 = vpop.f32.mrb[0].mxu0
  %v1721 = vadd.f32 %v1648, %v1720
  %v1722 = vpop.f32.mrb[0].mxu0
  %v1723 = vadd.f32 %v1650, %v1722
  %v1724 = vpop.f32.mrb[0].mxu0
  %v1725 = vadd.f32 %v1652, %v1724
  %v1726 = vpop.f32.mrb[0].mxu0
  %v1727 = vadd.f32 %v1654, %v1726
  %1728 = vdwg.mxu0
  %v1729 = vmax.f32 %v1691, %v1711
  %v1730 = vmax.f32 %v1693, %v1713
  %v1731 = vmax.f32 %v1695, %v1715
  %v1732 = vmax.f32 %v1697, %v1717
  %v1733 = vmax.f32 %v1701, %v1721
  %v1734 = vmax.f32 %v1703, %v1723
  %v1735 = vmax.f32 %v1705, %v1725
  %v1736 = vmax.f32 %v1707, %v1727
  %v1737 = vmax.f32 %v1729, %v1730
  %v1738 = vmax.f32 %v1731, %v1732
  %v1739 = vmax.f32 %v1733, %v1734
  %v1740 = vmax.f32 %v1735, %v1736
  %v1741 = vld [vmem:[%s4] sm:$0x1]
  %v1743 = vlaneseq
  %v1744 = vshrl.u32 %v1743, 7
  %v1745 = vsub.s32 0, %v1744
  %v1746 = vrot.slane %v1741, %v1745
  %v1748 = vadd.f32 %v1737, %v1746
  %v1749 = vadd.f32 %v1738, %v1746
  %v1750 = vadd.f32 %v1739, %v1746
  %v1751 = vadd.f32 %v1740, %v1746
  %v1752 = vmax.f32 %v1748, 0.0
  %v1753 = vmax.f32 %v1749, 0.0
  %v1754 = vmax.f32 %v1750, 0.0
  %v1755 = vmax.f32 %v1751, 0.0
  %v1756 = vpack.c.bf16 %v1753, %v1752
  %v1757 = vpack.c.bf16 %v1755, %v1754
  %v1759 = vunpack.i.l.s16 %v1756
  %v1760 = vunpack.i.h.s16 %v1756
  %v1761 = vpack.c.b16 %v1760, %v1759
  %v1762 = vunpack.i.l.s16 %v1761
  %v1763 = vunpack.i.h.s16 %v1761
  %v1764 = vpack.c.b16 %v1763, %v1762
  %v1766 = vunpack.i.l.s16 %v1757
  %v1767 = vunpack.i.h.s16 %v1757
  %v1768 = vpack.c.b16 %v1767, %v1766
  %v1769 = vunpack.i.l.s16 %v1768
  %v1770 = vunpack.i.h.s16 %v1768
  %v1771 = vpack.c.b16 %v1770, %v1769
  %v1772 = vld [vmem:[%s5] sm:$0xf]
  %v1773 = vld [vmem:[%s5 + $0x4] sm:$0xf]
  %v1774 = vld [vmem:[%s5 + $0x8] sm:$0xf]
  %v1775 = vld [vmem:[%s5 + $0xc] sm:$0xf]
  %v1776 = vld [vmem:[%s5 + $0x10] sm:$0xf]
  %v1777 = vld [vmem:[%s5 + $0x14] sm:$0xf]
  %v1778 = vld [vmem:[%s5 + $0x18] sm:$0xf]
  %v1779 = vld [vmem:[%s5 + $0x1c] sm:$0xf]
  %v1780 = vld [vmem:[%s5 + $0x20] sm:$0xf]
  %v1781 = vld [vmem:[%s5 + $0x24] sm:$0xf]
  %v1782 = vld [vmem:[%s5 + $0x28] sm:$0xf]
  %v1783 = vld [vmem:[%s5 + $0x2c] sm:$0xf]
  %v1784 = vld [vmem:[%s5 + $0x30] sm:$0xf]
  %v1785 = vld [vmem:[%s5 + $0x34] sm:$0xf]
  %v1786 = vld [vmem:[%s5 + $0x38] sm:$0xf]
  %v1787 = vld [vmem:[%s5 + $0x3c] sm:$0xf]
  %v1788 = vld [vmem:[%s5 + $0x40] sm:$0xf]
  %v1789 = vld [vmem:[%s5 + $0x44] sm:$0xf]
  %v1790 = vld [vmem:[%s5 + $0x48] sm:$0xf]
  %v1791 = vld [vmem:[%s5 + $0x4c] sm:$0xf]
  %v1792 = vld [vmem:[%s5 + $0x50] sm:$0xf]
  %v1793 = vld [vmem:[%s5 + $0x54] sm:$0xf]
  %v1794 = vld [vmem:[%s5 + $0x58] sm:$0xf]
  %v1795 = vld [vmem:[%s5 + $0x5c] sm:$0xf]
  %v1796 = vld [vmem:[%s5 + $0x60] sm:$0xf]
  %v1797 = vld [vmem:[%s5 + $0x64] sm:$0xf]
  %v1798 = vld [vmem:[%s5 + $0x68] sm:$0xf]
  %v1799 = vld [vmem:[%s5 + $0x6c] sm:$0xf]
  %v1800 = vld [vmem:[%s5 + $0x70] sm:$0xf]
  %v1801 = vld [vmem:[%s5 + $0x74] sm:$0xf]
  %v1802 = vld [vmem:[%s5 + $0x78] sm:$0xf]
  %v1803 = vld [vmem:[%s5 + $0x7c] sm:$0xf]
  %v1804 = vld [vmem:[%s5 + $0x80] sm:$0xf]
  %v1805 = vld [vmem:[%s5 + $0x84] sm:$0xf]
  %v1806 = vld [vmem:[%s5 + $0x88] sm:$0xf]
  %v1807 = vld [vmem:[%s5 + $0x8c] sm:$0xf]
  %v1808 = vld [vmem:[%s5 + $0x90] sm:$0xf]
  %v1809 = vld [vmem:[%s5 + $0x94] sm:$0xf]
  %v1810 = vld [vmem:[%s5 + $0x98] sm:$0xf]
  %v1811 = vld [vmem:[%s5 + $0x9c] sm:$0xf]
  %v1812 = vld [vmem:[%s5 + $0xa0] sm:$0xf]
  %v1813 = vld [vmem:[%s5 + $0xa4] sm:$0xf]
  %v1814 = vld [vmem:[%s5 + $0xa8] sm:$0xf]
  %v1815 = vld [vmem:[%s5 + $0xac] sm:$0xf]
  %v1816 = vld [vmem:[%s5 + $0xb0] sm:$0xf]
  %v1817 = vld [vmem:[%s5 + $0xb4] sm:$0xf]
  %v1818 = vld [vmem:[%s5 + $0xb8] sm:$0xf]
  %v1819 = vld [vmem:[%s5 + $0xbc] sm:$0xf]
  %v1820 = vld [vmem:[%s5 + $0xc0] sm:$0xf]
  %v1821 = vld [vmem:[%s5 + $0xc4] sm:$0xf]
  %v1822 = vld [vmem:[%s5 + $0xc8] sm:$0xf]
  %v1823 = vld [vmem:[%s5 + $0xcc] sm:$0xf]
  %v1824 = vld [vmem:[%s5 + $0xd0] sm:$0xf]
  %v1825 = vld [vmem:[%s5 + $0xd4] sm:$0xf]
  %v1826 = vld [vmem:[%s5 + $0xd8] sm:$0xf]
  %v1827 = vld [vmem:[%s5 + $0xdc] sm:$0xf]
  %v1828 = vld [vmem:[%s5 + $0xe0] sm:$0xf]
  %v1829 = vld [vmem:[%s5 + $0xe4] sm:$0xf]
  %v1830 = vld [vmem:[%s5 + $0xe8] sm:$0xf]
  %v1831 = vld [vmem:[%s5 + $0xec] sm:$0xf]
  %v1832 = vld [vmem:[%s5 + $0xf0] sm:$0xf]
  %v1833 = vld [vmem:[%s5 + $0xf4] sm:$0xf]
  %v1834 = vld [vmem:[%s5 + $0xf8] sm:$0xf]
  %v1835 = vld [vmem:[%s5 + $0xfc] sm:$0xf]
  %v1836 = vld [vmem:[%s6] sm:$0x1]
  %v1838 = vlaneseq
  %v1839 = vshrl.u32 %v1838, 7
  %v1840 = vsub.s32 0, %v1839
  %v1841 = vrot.slane %v1836, %v1840
  %v1843 = vcombine.low %v1764, %v1771
  %v1844 = vcombine.high %v1764, %v1771
  %v1846 = vunpack.c.l.s4 1983009808
  %v1847 = vunpack.c.0.s8 %v1846
  %v1848 = vlaneseq
  %v1849 = vshrl.u32 %v1848, 7
  %v1850 = vsub.s32 %v1847, %v1849
  %v1851 = vrot.slane %v1843, %v1850
  %v1853 = vunpack.c.l.s4 1983009808
  %v1854 = vunpack.c.0.s8 %v1853
  %v1855 = vlaneseq
  %v1856 = vshrl.u32 %v1855, 7
  %v1857 = vsub.s32 %v1854, %v1856
  %v1858 = vrot.slane %v1844, %v1857
  %v1859 = vcombine.high %v1851, %v1851
  %v1860 = vcombine.high %v1858, %v1858
  %v1929 = vunpack.c.l.b16 %v1772
  %v1930 = vunpack.c.l.b16 %v1773
  %v1931 = vunpack.c.l.b16 %v1774
  %v1932 = vunpack.c.l.b16 %v1775
  %v1933 = vunpack.c.l.b16 %v1776
  %v1934 = vunpack.c.l.b16 %v1777
  %v1935 = vunpack.c.l.b16 %v1778
  %v1936 = vunpack.c.l.b16 %v1779
  %v1937 = vunpack.c.l.b16 %v1780
  %v1938 = vunpack.c.l.b16 %v1781
  %v1939 = vunpack.c.l.b16 %v1782
  %v1940 = vunpack.c.l.b16 %v1783
  %v1941 = vunpack.c.l.b16 %v1784
  %v1942 = vunpack.c.l.b16 %v1785
  %v1943 = vunpack.c.l.b16 %v1786
  %v1944 = vunpack.c.l.b16 %v1787
  %v1945 = vunpack.c.l.b16 %v1788
  %v1946 = vunpack.c.l.b16 %v1789
  %v1947 = vunpack.c.l.b16 %v1790
  %v1948 = vunpack.c.l.b16 %v1791
  %v1949 = vunpack.c.l.b16 %v1792
  %v1950 = vunpack.c.l.b16 %v1793
  %v1951 = vunpack.c.l.b16 %v1794
  %v1952 = vunpack.c.l.b16 %v1795
  %v1953 = vunpack.c.l.b16 %v1796
  %v1954 = vunpack.c.l.b16 %v1797
  %v1955 = vunpack.c.l.b16 %v1798
  %v1956 = vunpack.c.l.b16 %v1799
  %v1957 = vunpack.c.l.b16 %v1800
  %v1958 = vunpack.c.l.b16 %v1801
  %v1959 = vunpack.c.l.b16 %v1802
  %v1960 = vunpack.c.l.b16 %v1803
  %v1961 = vunpack.c.l.b16 %v1804
  %v1962 = vunpack.c.l.b16 %v1805
  %v1963 = vunpack.c.l.b16 %v1806
  %v1964 = vunpack.c.l.b16 %v1807
  %v1965 = vunpack.c.l.b16 %v1808
  %v1966 = vunpack.c.l.b16 %v1809
  %v1967 = vunpack.c.l.b16 %v1810
  %v1968 = vunpack.c.l.b16 %v1811
  %v1969 = vunpack.c.l.b16 %v1812
  %v1970 = vunpack.c.l.b16 %v1813
  %v1971 = vunpack.c.l.b16 %v1814
  %v1972 = vunpack.c.l.b16 %v1815
  %v1973 = vunpack.c.l.b16 %v1816
  %v1974 = vunpack.c.l.b16 %v1817
  %v1975 = vunpack.c.l.b16 %v1818
  %v1976 = vunpack.c.l.b16 %v1819
  %v1977 = vunpack.c.l.b16 %v1820
  %v1978 = vunpack.c.l.b16 %v1821
  %v1979 = vunpack.c.l.b16 %v1822
  %v1980 = vunpack.c.l.b16 %v1823
  %v1981 = vunpack.c.l.b16 %v1824
  %v1982 = vunpack.c.l.b16 %v1825
  %v1983 = vunpack.c.l.b16 %v1826
  %v1984 = vunpack.c.l.b16 %v1827
  %v1985 = vunpack.c.l.b16 %v1828
  %v1986 = vunpack.c.l.b16 %v1829
  %v1987 = vunpack.c.l.b16 %v1830
  %v1988 = vunpack.c.l.b16 %v1831
  %v1989 = vunpack.c.l.b16 %v1832
  %v1990 = vunpack.c.l.b16 %v1833
  %v1991 = vunpack.c.l.b16 %v1834
  %v1992 = vunpack.c.l.b16 %v1835
  %v1993 = vpack.c.b16 %v1930, %v1929
  %v1994 = vpack.c.b16 %v1932, %v1931
  %v1995 = vpack.c.b16 %v1934, %v1933
  %v1996 = vpack.c.b16 %v1936, %v1935
  %v1997 = vpack.c.b16 %v1938, %v1937
  %v1998 = vpack.c.b16 %v1940, %v1939
  %v1999 = vpack.c.b16 %v1942, %v1941
  %v2000 = vpack.c.b16 %v1944, %v1943
  %v2001 = vpack.c.b16 %v1946, %v1945
  %v2002 = vpack.c.b16 %v1948, %v1947
  %v2003 = vpack.c.b16 %v1950, %v1949
  %v2004 = vpack.c.b16 %v1952, %v1951
  %v2005 = vpack.c.b16 %v1954, %v1953
  %v2006 = vpack.c.b16 %v1956, %v1955
  %v2007 = vpack.c.b16 %v1958, %v1957
  %v2008 = vpack.c.b16 %v1960, %v1959
  %v2009 = vpack.c.b16 %v1962, %v1961
  %v2010 = vpack.c.b16 %v1964, %v1963
  %v2011 = vpack.c.b16 %v1966, %v1965
  %v2012 = vpack.c.b16 %v1968, %v1967
  %v2013 = vpack.c.b16 %v1970, %v1969
  %v2014 = vpack.c.b16 %v1972, %v1971
  %v2015 = vpack.c.b16 %v1974, %v1973
  %v2016 = vpack.c.b16 %v1976, %v1975
  %v2017 = vpack.c.b16 %v1978, %v1977
  %v2018 = vpack.c.b16 %v1980, %v1979
  %v2019 = vpack.c.b16 %v1982, %v1981
  %v2020 = vpack.c.b16 %v1984, %v1983
  %v2021 = vpack.c.b16 %v1986, %v1985
  %v2022 = vpack.c.b16 %v1988, %v1987
  %v2023 = vpack.c.b16 %v1990, %v1989
  %v2024 = vpack.c.b16 %v1992, %v1991
  %2057 = vmatprep.subr.bf16.mxu0 0
  %2058 = vmatpush1.bf16.msra.mxu0 %v1993
  %2059 = vmatprep.subr.bf16.mxu0 0
  %2060 = vmatpush1.bf16.msra.mxu0 %v1994
  %2061 = vmatprep.subr.bf16.mxu0 0
  %2062 = vmatpush1.bf16.msra.mxu0 %v1995
  %2063 = vmatprep.subr.bf16.mxu0 0
  %2064 = vmatpush1.bf16.msra.mxu0 %v1996
  %2065 = vmatprep.subr.bf16.mxu0 0
  %2066 = vmatpush1.bf16.msra.mxu0 %v1997
  %2067 = vmatprep.subr.bf16.mxu0 0
  %2068 = vmatpush1.bf16.msra.mxu0 %v1998
  %2069 = vmatprep.subr.bf16.mxu0 0
  %2070 = vmatpush1.bf16.msra.mxu0 %v1999
  %2071 = vmatprep.subr.bf16.mxu0 0
  %2072 = vmatpush1.bf16.msra.mxu0 %v2000
  %2073 = vmatprep.subr.bf16.mxu0 0
  %2074 = vmatpush1.bf16.msra.mxu0 %v2001
  %2075 = vmatprep.subr.bf16.mxu0 0
  %2076 = vmatpush1.bf16.msra.mxu0 %v2002
  %2077 = vmatprep.subr.bf16.mxu0 0
  %2078 = vmatpush1.bf16.msra.mxu0 %v2003
  %2079 = vmatprep.subr.bf16.mxu0 0
  %2080 = vmatpush1.bf16.msra.mxu0 %v2004
  %2081 = vmatprep.subr.bf16.mxu0 0
  %2082 = vmatpush1.bf16.msra.mxu0 %v2005
  %2083 = vmatprep.subr.bf16.mxu0 0
  %2084 = vmatpush1.bf16.msra.mxu0 %v2006
  %2085 = vmatprep.subr.bf16.mxu0 0
  %2086 = vmatpush1.bf16.msra.mxu0 %v2007
  %2087 = vmatprep.subr.bf16.mxu0 0
  %2088 = vmatpush1.bf16.msra.mxu0 %v2008
  %2089 = vmatprep.mubr.bf16.mxu0 %v1859
  %2090 = vmatmul.mubr.bf16.gmra.mrb[0].mxu0 %v1851
  %v2091 = vpop.f32.mrb[0].mxu0
  %v2092 = vadd.f32 %v1841, %v2091
  %v2093 = vpop.f32.mrb[0].mxu0
  %v2094 = vpop.f32.mrb[0].mxu0
  %v2095 = vpop.f32.mrb[0].mxu0
  %2096 = vdwg.mxu0
  %2097 = vmatprep.subr.bf16.mxu0 0
  %2098 = vmatpush1.bf16.msra.mxu0 %v2009
  %2099 = vmatprep.subr.bf16.mxu0 0
  %2100 = vmatpush1.bf16.msra.mxu0 %v2010
  %2101 = vmatprep.subr.bf16.mxu0 0
  %2102 = vmatpush1.bf16.msra.mxu0 %v2011
  %2103 = vmatprep.subr.bf16.mxu0 0
  %2104 = vmatpush1.bf16.msra.mxu0 %v2012
  %2105 = vmatprep.subr.bf16.mxu0 0
  %2106 = vmatpush1.bf16.msra.mxu0 %v2013
  %2107 = vmatprep.subr.bf16.mxu0 0
  %2108 = vmatpush1.bf16.msra.mxu0 %v2014
  %2109 = vmatprep.subr.bf16.mxu0 0
  %2110 = vmatpush1.bf16.msra.mxu0 %v2015
  %2111 = vmatprep.subr.bf16.mxu0 0
  %2112 = vmatpush1.bf16.msra.mxu0 %v2016
  %2113 = vmatprep.subr.bf16.mxu0 0
  %2114 = vmatpush1.bf16.msra.mxu0 %v2017
  %2115 = vmatprep.subr.bf16.mxu0 0
  %2116 = vmatpush1.bf16.msra.mxu0 %v2018
  %2117 = vmatprep.subr.bf16.mxu0 0
  %2118 = vmatpush1.bf16.msra.mxu0 %v2019
  %2119 = vmatprep.subr.bf16.mxu0 0
  %2120 = vmatpush1.bf16.msra.mxu0 %v2020
  %2121 = vmatprep.subr.bf16.mxu0 0
  %2122 = vmatpush1.bf16.msra.mxu0 %v2021
  %2123 = vmatprep.subr.bf16.mxu0 0
  %2124 = vmatpush1.bf16.msra.mxu0 %v2022
  %2125 = vmatprep.subr.bf16.mxu0 0
  %2126 = vmatpush1.bf16.msra.mxu0 %v2023
  %2127 = vmatprep.subr.bf16.mxu0 0
  %2128 = vmatpush1.bf16.msra.mxu0 %v2024
  %2129 = vmatprep.mubr.bf16.mxu0 %v1860
  %2130 = vmatmul.mubr.bf16.gmra.mrb[0].mxu0 %v1858
  %v2131 = vpop.f32.mrb[0].mxu0
  %v2132 = vadd.f32 %v2092, %v2131
  %v2133 = vpop.f32.mrb[0].mxu0
  %v2134 = vpop.f32.mrb[0].mxu0
  %v2135 = vpop.f32.mrb[0].mxu0
  %2136 = vdwg.mxu0
  %v2137 = vmax.f32 %v2132, 0.0
  %v2138 = vpack.c.bf16 %v2137, %v2137
  %v2139 = vld [vmem:[%s7] sm:$0xf]
  %v2140 = vld [vmem:[%s7 + $0x4] sm:$0xf]
  %v2141 = vld [vmem:[%s7 + $0x8] sm:$0xf]
  %v2142 = vld [vmem:[%s7 + $0xc] sm:$0xf]
  %v2143 = vld [vmem:[%s7 + $0x10] sm:$0xf]
  %v2144 = vld [vmem:[%s7 + $0x14] sm:$0xf]
  %v2145 = vld [vmem:[%s7 + $0x18] sm:$0xf]
  %v2146 = vld [vmem:[%s7 + $0x1c] sm:$0xf]
  %v2147 = vld [vmem:[%s7 + $0x20] sm:$0xf]
  %v2148 = vld [vmem:[%s7 + $0x24] sm:$0xf]
  %v2149 = vld [vmem:[%s7 + $0x28] sm:$0xf]
  %v2150 = vld [vmem:[%s7 + $0x2c] sm:$0xf]
  %v2151 = vld [vmem:[%s7 + $0x30] sm:$0xf]
  %v2152 = vld [vmem:[%s7 + $0x34] sm:$0xf]
  %v2153 = vld [vmem:[%s7 + $0x38] sm:$0xf]
  %v2154 = vld [vmem:[%s7 + $0x3c] sm:$0xf]
  %v2155 = vld [vmem:[%s8] sm:$0x1]
  %v2157 = vlaneseq
  %v2158 = vshrl.u32 %v2157, 7
  %v2159 = vsub.s32 0, %v2158
  %v2160 = vrot.slane %v2155, %v2159
  %v2178 = vunpack.c.l.b16 %v2139
  %v2179 = vunpack.c.l.b16 %v2140
  %v2180 = vunpack.c.l.b16 %v2141
  %v2181 = vunpack.c.l.b16 %v2142
  %v2182 = vunpack.c.l.b16 %v2143
  %v2183 = vunpack.c.l.b16 %v2144
  %v2184 = vunpack.c.l.b16 %v2145
  %v2185 = vunpack.c.l.b16 %v2146
  %v2186 = vunpack.c.l.b16 %v2147
  %v2187 = vunpack.c.l.b16 %v2148
  %v2188 = vunpack.c.l.b16 %v2149
  %v2189 = vunpack.c.l.b16 %v2150
  %v2190 = vunpack.c.l.b16 %v2151
  %v2191 = vunpack.c.l.b16 %v2152
  %v2192 = vunpack.c.l.b16 %v2153
  %v2193 = vunpack.c.l.b16 %v2154
  %v2194 = vpack.c.b16 %v2179, %v2178
  %v2195 = vpack.c.b16 %v2181, %v2180
  %v2196 = vpack.c.b16 %v2183, %v2182
  %v2197 = vpack.c.b16 %v2185, %v2184
  %v2198 = vpack.c.b16 %v2187, %v2186
  %v2199 = vpack.c.b16 %v2189, %v2188
  %v2200 = vpack.c.b16 %v2191, %v2190
  %v2201 = vpack.c.b16 %v2193, %v2192
  %2210 = vmatprep.subr.bf16.mxu0 0
  %2211 = vmatpush1.bf16.msra.mxu0 %v2194
  %2212 = vmatprep.subr.bf16.mxu0 0
  %2213 = vmatpush1.bf16.msra.mxu0 %v2195
  %2214 = vmatprep.subr.bf16.mxu0 0
  %2215 = vmatpush1.bf16.msra.mxu0 %v2196
  %2216 = vmatprep.subr.bf16.mxu0 0
  %2217 = vmatpush1.bf16.msra.mxu0 %v2197
  %2218 = vmatprep.subr.bf16.mxu0 0
  %2219 = vmatpush1.bf16.msra.mxu0 %v2198
  %2220 = vmatprep.subr.bf16.mxu0 0
  %2221 = vmatpush1.bf16.msra.mxu0 %v2199
  %2222 = vmatprep.subr.bf16.mxu0 0
  %2223 = vmatpush1.bf16.msra.mxu0 %v2200
  %2224 = vmatprep.subr.bf16.mxu0 0
  %2225 = vmatpush1.bf16.msra.mxu0 %v2201
  %2226 = vmatprep.subr.bf16.mxu0 0
  %2227 = vmatpush1.bf16.msra.mxu0 0
  %2228 = vmatprep.subr.bf16.mxu0 0
  %2229 = vmatpush1.bf16.msra.mxu0 0
  %2230 = vmatprep.subr.bf16.mxu0 0
  %2231 = vmatpush1.bf16.msra.mxu0 0
  %2232 = vmatprep.subr.bf16.mxu0 0
  %2233 = vmatpush1.bf16.msra.mxu0 0
  %2234 = vmatprep.subr.bf16.mxu0 0
  %2235 = vmatpush1.bf16.msra.mxu0 0
  %2236 = vmatprep.subr.bf16.mxu0 0
  %2237 = vmatpush1.bf16.msra.mxu0 0
  %2238 = vmatprep.subr.bf16.mxu0 0
  %2239 = vmatpush1.bf16.msra.mxu0 0
  %2240 = vmatprep.subr.bf16.mxu0 0
  %2241 = vmatpush1.bf16.msra.mxu0 0
  %2242 = vmatprep.mubr.bf16.mxu0 0
  %2243 = vmatmul.mubr.bf16.gmra.mrb[0].mxu0 %v2138
  %v2244 = vpop.f32.mrb[0].mxu0
  %v2245 = vadd.f32 %v2160, %v2244
  %v2246 = vpop.f32.mrb[0].mxu0
  %v2247 = vpop.f32.mrb[0].mxu0
  %v2248 = vpop.f32.mrb[0].mxu0
  %2249 = vdwg.mxu0
  %v2250 = vmax.f32 %v2245, 0.0
  %v2251 = vpack.c.bf16 %v2250, %v2250
  %v2252 = vld [vmem:[%s9] sm:$0xf]
  %v2253 = vld [vmem:[%s9 + $0x4] sm:$0xf]
  %v2254 = vld [vmem:[%s9 + $0x8] sm:$0xf]
  %v2255 = vld [vmem:[%s9 + $0xc] sm:$0xf]
  %v2256 = vld [vmem:[%s9 + $0x10] sm:$0xf]
  %v2257 = vld [vmem:[%s9 + $0x14] sm:$0xf]
  %v2258 = vld [vmem:[%s9 + $0x18] sm:$0xf]
  %v2259 = vld [vmem:[%s9 + $0x1c] sm:$0xf]
  %v2260 = vld [vmem:[%s9 + $0x20] sm:$0xf]
  %v2261 = vld [vmem:[%s9 + $0x24] sm:$0xf]
  %v2262 = vld [vmem:[%s9 + $0x28] sm:$0xf]
  %v2263 = vld [vmem:[%s9 + $0x2c] sm:$0xf]
  %v2264 = vld [vmem:[%s9 + $0x30] sm:$0xf]
  %v2265 = vld [vmem:[%s9 + $0x34] sm:$0xf]
  %v2266 = vld [vmem:[%s9 + $0x38] sm:$0xf]
  %v2267 = vld [vmem:[%s9 + $0x3c] sm:$0xf]
  %v2268 = vld [vmem:[%s10] sm:$0x1]
  %v2270 = vlaneseq
  %v2271 = vshrl.u32 %v2270, 7
  %v2272 = vsub.s32 0, %v2271
  %v2273 = vrot.slane %v2268, %v2272
  %v2291 = vunpack.c.l.b16 %v2252
  %v2292 = vunpack.c.l.b16 %v2253
  %v2293 = vunpack.c.l.b16 %v2254
  %v2294 = vunpack.c.l.b16 %v2255
  %v2295 = vunpack.c.l.b16 %v2256
  %v2296 = vunpack.c.l.b16 %v2257
  %v2297 = vunpack.c.l.b16 %v2258
  %v2298 = vunpack.c.l.b16 %v2259
  %v2299 = vunpack.c.l.b16 %v2260
  %v2300 = vunpack.c.l.b16 %v2261
  %v2301 = vunpack.c.l.b16 %v2262
  %v2302 = vunpack.c.l.b16 %v2263
  %v2303 = vunpack.c.l.b16 %v2264
  %v2304 = vunpack.c.l.b16 %v2265
  %v2305 = vunpack.c.l.b16 %v2266
  %v2306 = vunpack.c.l.b16 %v2267
  %v2307 = vpack.c.b16 %v2292, %v2291
  %v2308 = vpack.c.b16 %v2294, %v2293
  %v2309 = vpack.c.b16 %v2296, %v2295
  %v2310 = vpack.c.b16 %v2298, %v2297
  %v2311 = vpack.c.b16 %v2300, %v2299
  %v2312 = vpack.c.b16 %v2302, %v2301
  %v2313 = vpack.c.b16 %v2304, %v2303
  %v2314 = vpack.c.b16 %v2306, %v2305
  %2323 = vmatprep.subr.bf16.mxu0 0
  %2324 = vmatpush1.bf16.msra.mxu0 %v2307
  %2325 = vmatprep.subr.bf16.mxu0 0
  %2326 = vmatpush1.bf16.msra.mxu0 %v2308
  %2327 = vmatprep.subr.bf16.mxu0 0
  %2328 = vmatpush1.bf16.msra.mxu0 %v2309
  %2329 = vmatprep.subr.bf16.mxu0 0
  %2330 = vmatpush1.bf16.msra.mxu0 %v2310
  %2331 = vmatprep.subr.bf16.mxu0 0
  %2332 = vmatpush1.bf16.msra.mxu0 %v2311
  %2333 = vmatprep.subr.bf16.mxu0 0
  %2334 = vmatpush1.bf16.msra.mxu0 %v2312
  %2335 = vmatprep.subr.bf16.mxu0 0
  %2336 = vmatpush1.bf16.msra.mxu0 %v2313
  %2337 = vmatprep.subr.bf16.mxu0 0
  %2338 = vmatpush1.bf16.msra.mxu0 %v2314
  %2339 = vmatprep.subr.bf16.mxu0 0
  %2340 = vmatpush1.bf16.msra.mxu0 0
  %2341 = vmatprep.subr.bf16.mxu0 0
  %2342 = vmatpush1.bf16.msra.mxu0 0
  %2343 = vmatprep.subr.bf16.mxu0 0
  %2344 = vmatpush1.bf16.msra.mxu0 0
  %2345 = vmatprep.subr.bf16.mxu0 0
  %2346 = vmatpush1.bf16.msra.mxu0 0
  %2347 = vmatprep.subr.bf16.mxu0 0
  %2348 = vmatpush1.bf16.msra.mxu0 0
  %2349 = vmatprep.subr.bf16.mxu0 0
  %2350 = vmatpush1.bf16.msra.mxu0 0
  %2351 = vmatprep.subr.bf16.mxu0 0
  %2352 = vmatpush1.bf16.msra.mxu0 0
  %2353 = vmatprep.subr.bf16.mxu0 0
  %2354 = vmatpush1.bf16.msra.mxu0 0
  %2355 = vmatprep.mubr.bf16.mxu0 0
  %2356 = vmatmul.mubr.bf16.gmra.mrb[0].mxu0 %v2251
  %v2357 = vpop.f32.mrb[0].mxu0
  %v2358 = vadd.f32 %v2273, %v2357
  %v2359 = vpop.f32.mrb[0].mxu0
  %v2360 = vpop.f32.mrb[0].mxu0
  %v2361 = vpop.f32.mrb[0].mxu0
  %2362 = vdwg.mxu0
  %2363 = vst [vmem:[%s11] sm:$0xff] %v2358
  // Predicated region
  $region46: #{net_forward.1} parent=0 // pred_check
    _
  $region47: #{net_forward.1} parent=0 // pred_check_branch
    %2365 = sbr.rel (0) target = $region49
  $region48: #{net_forward.1} parent=0 // pred_region
    _
  $region49: #{net_forward.1} parent=0 // pred_fallthru
    _
  // Predicated region
  $region50: #{net_forward.1} parent=0 // pred_check
    _
  $region51: #{net_forward.1} parent=0 // pred_check_branch
    %2367 = sbr.rel (0) target = $region53
  $region52: #{net_forward.1} parent=0 // pred_region
    _
  $region53: #{net_forward.1} parent=0 // pred_fallthru
    _

</llo_original>
